<compile_context>
chip_gen: v7x
topology: tpu7x:2x2x1
jax: 0.10.0
libtpu: 0.0.40
codegen_flags: <defaults>
</compile_context>

<pallas_src>
import functools

import jax
import jax.numpy as jnp
from jax.experimental import pallas as pl
from jax.experimental.pallas import tpu as pltpu


def _round_up(n, m):
    return ((n + m - 1) // m) * m


def wifi_cnn_kernel(x_ref, w1_ref, b1_ref, w2_ref, b2_ref,
                    fc1w_ref, fc1b_ref, fc2w_ref, fc2b_ref, o_ref):
    mm = w1_ref.dtype                              # bf16 MXU operand dtype

    # conv1 as one block-Toeplitz matmul: (TB, L*C0) @ (L*C0, L*C1)
    h1 = jnp.dot(x_ref[...], w1_ref[...], preferred_element_type=jnp.float32)
    h1 = jnp.maximum(h1 + b1_ref[...], 0.0).astype(mm)
    # TODO(synk): dropout1 / dropout2 are identity (inference / eval mode).

    # conv2 as one block-Toeplitz matmul: (TB, L*C1) @ (L*C1, L*C2)
    h2 = jnp.dot(h1, w2_ref[...], preferred_element_type=jnp.float32)
    h2 = jnp.maximum(h2 + b2_ref[...], 0.0).astype(mm)

    # fc1: h2 is already the L-major flatten; weight was pre-permuted to match
    h3 = jnp.dot(h2, fc1w_ref[...], preferred_element_type=jnp.float32)
    h3 = jnp.maximum(h3 + fc1b_ref[...], 0.0)      # keep f32 into fc2

    # fc2 (classes padded to a lane-dense 128-wide store)
    out = jnp.dot(h3, fc2w_ref[...],
                  preferred_element_type=jnp.float32) + fc2b_ref[...]
    o_ref[...] = out.astype(o_ref.dtype)


def _block_toeplitz(w_ocik, L):
    """Expand a k=3 / padding=1 Conv1d weight (Cout, Cin, 3) into a dense
    (L*Cin, L*Cout) matrix acting on the L-major channels-last flatten."""
    Cout, Cin, K = w_ocik.shape
    wk = jnp.transpose(w_ocik, (2, 1, 0)).astype(jnp.float32)   # (K, Cin, Cout)
    W = jnp.zeros((L * Cin, L * Cout), jnp.float32)
    for j in range(L):                 # output position
        for k in range(K):             # tap
            l = j + k - (K // 2)       # input position ('same' zero padding)
            if 0 <= l < L:
                W = W.at[l * Cin:(l + 1) * Cin,
                         j * Cout:(j + 1) * Cout].set(wk[k])
    return W


def prepare_params(params):
    """One-time weight re-layout (hoisted out of the per-call path)."""
    C1 = params["conv1_w"].shape[0]
    C0 = params["conv1_w"].shape[1]                # 9
    C2 = params["conv2_w"].shape[0]
    L = params["fc1_w"].shape[1] // C2
    num_classes = params["fc2_w"].shape[0]
    ncp = _round_up(num_classes, 128)

    # conv layers -> block-Toeplitz matrices (built in f32, cast to bf16 once)
    w1 = _block_toeplitz(params["conv1_w"], L)                  # (L*C0, L*C1)
    w2 = _block_toeplitz(params["conv2_w"], L)                  # (L*C1, L*C2)
    # per-position broadcast of the conv biases (L-major layout)
    b1 = jnp.tile(params["conv1_b"].astype(jnp.float32), L).reshape(1, L * C1)
    b2 = jnp.tile(params["conv2_b"].astype(jnp.float32), L).reshape(1, L * C2)
    # fc1 (128, C2*L) channel-major -> (128, C2, L) -> (L, C2, 128) -> (L*C2, 128)
    fc1w = jnp.transpose(params["fc1_w"].reshape(128, C2, L),
                         (2, 1, 0)).reshape(L * C2, 128)
    # fc2 (num_classes, 128) -> (128, ncp) zero-padded, kept f32
    fc2w = jnp.pad(jnp.transpose(params["fc2_w"]),
                   ((0, 0), (0, ncp - num_classes)))
    fc2b = jnp.pad(params["fc2_b"], (0, ncp - num_classes))

    return dict(
        emb=params["emb"].astype(jnp.float32),
        w1=w1.astype(jnp.bfloat16),
        b1=b1,
        w2=w2.astype(jnp.bfloat16),
        b2=b2,
        fc1w=fc1w.astype(jnp.bfloat16),
        fc1b=params["fc1_b"].reshape(1, 128).astype(jnp.float32),
        fc2w=fc2w.astype(jnp.float32),
        fc2b=fc2b.reshape(1, ncp).astype(jnp.float32),
    )


@functools.partial(jax.jit, static_argnames=("num_classes", "block_b"))
def wifi_cnn_forward(x, mac, prep, *, num_classes, block_b=512):
    """x: (B, num_ap) float32 RSSI, mac: (B, num_ap) int32 ids."""
    B, L = x.shape
    KC0 = prep["w1"].shape[0]          # L * C0
    LC1 = prep["w1"].shape[1]
    LC2 = prep["w2"].shape[1]
    ncp = prep["fc2w"].shape[1]

    # glue: embedding lookup + concat (torch.cat([x.unsqueeze(2), emb], 2)),
    # flattened L-major and cast to bf16 (lane-dense, half the DMA bytes)
    x_cat = jnp.concatenate([x[:, :, None], prep["emb"][mac]], axis=2)
    x_flat = x_cat.reshape(B, KC0).astype(jnp.bfloat16)         # (B, L*9)

    # batch tiling: sublane-aligned tile; prefer >=2 grid steps (v7x megacore)
    b8 = _round_up(B, 8)
    tb = min(block_b, b8)
    if tb == b8 and b8 >= 16:
        tb = _round_up((B + 1) // 2, 8)
    b_pad = _round_up(B, tb)
    if b_pad != B:
        x_flat = jnp.pad(x_flat, ((0, b_pad - B), (0, 0)))

    const2 = lambda i: (0, 0)                      # weights stay VMEM-resident
    out = pl.pallas_call(
        wifi_cnn_kernel,
        out_shape=jax.ShapeDtypeStruct((b_pad, ncp), jnp.float32),
        grid=(b_pad // tb,),
        in_specs=[
            pl.BlockSpec((tb, KC0), lambda i: (i, 0)),          # x_flat
            pl.BlockSpec((KC0, LC1), const2),                   # conv1 Toeplitz
            pl.BlockSpec((1, LC1), const2),                     # conv1 bias
            pl.BlockSpec((LC1, LC2), const2),                   # conv2 Toeplitz
            pl.BlockSpec((1, LC2), const2),                     # conv2 bias
            pl.BlockSpec((LC2, 128), const2),                   # fc1w
            pl.BlockSpec((1, 128), const2),                     # fc1b
            pl.BlockSpec((128, ncp), const2),                   # fc2w (f32)
            pl.BlockSpec((1, ncp), const2),                     # fc2b
        ],
        out_specs=pl.BlockSpec((tb, ncp), lambda i: (i, 0)),
        compiler_params=pltpu.CompilerParams(
            dimension_semantics=("parallel",)),
    )(x_flat, prep["w1"], prep["b1"], prep["w2"], prep["b2"],
      prep["fc1w"], prep["fc1b"], prep["fc2w"], prep["fc2b"])
    return out[:B, :num_classes]


def _reference_forward(x, mac, params):
    """Pure-JAX f32 reference with PyTorch-identical math (for validation)."""
    emb = params["emb"]
    B, L = x.shape
    x_cat = jnp.concatenate([x[:, :, None], emb[mac]], axis=2).astype(jnp.float32)

    def conv_same(xin, w_ocik, b):
        wk = jnp.transpose(w_ocik, (2, 1, 0))      # (3, Cin, Cout)
        zero = jnp.zeros((xin.shape[0], 1, xin.shape[2]), xin.dtype)
        xp = jnp.concatenate([zero, xin, zero], axis=1)
        out = sum(jnp.einsum("blc,co->blo", xp[:, k:k + L, :], wk[k]) for k in range(3))
        return out + b[None, None, :]

    h1 = jax.nn.relu(conv_same(x_cat, params["conv1_w"], params["conv1_b"]))
    h2 = jax.nn.relu(conv_same(h1, params["conv2_w"], params["conv2_b"]))
    flat = jnp.transpose(h2, (0, 2, 1)).reshape(B, -1)          # channel-major flatten
    h3 = jax.nn.relu(flat @ params["fc1_w"].T + params["fc1_b"])
    return h3 @ params["fc2_w"].T + params["fc2_b"]


if __name__ == "__main__":
    # Small, deterministic configuration.
    num_ap, num_classes, num_mac = 16, 8, 20
    conv1_channels, conv2_channels = 32, 64

    key = jax.random.PRNGKey(0)
    ks = jax.random.split(key, 16)

    emb = 0.1 * jax.random.normal(ks[0], (num_mac + 1, 8), jnp.float32)
    emb = emb.at[0].set(0.0)  # padding_idx=0

    params = dict(
        emb=emb,
        conv1_w=0.1 * jax.random.normal(ks[1], (conv1_channels, 9, 3), jnp.float32),
        conv1_b=0.1 * jax.random.normal(ks[2], (conv1_channels,), jnp.float32),
        conv2_w=0.1 * jax.random.normal(ks[3], (conv2_channels, conv1_channels, 3), jnp.float32),
        conv2_b=0.1 * jax.random.normal(ks[4], (conv2_channels,), jnp.float32),
        fc1_w=0.05 * jax.random.normal(ks[5], (128, conv2_channels * num_ap), jnp.float32),
        fc1_b=0.05 * jax.random.normal(ks[6], (128,), jnp.float32),
        fc2_w=0.05 * jax.random.normal(ks[7], (num_classes, 128), jnp.float32),
        fc2_b=0.05 * jax.random.normal(ks[8], (num_classes,), jnp.float32),
    )
    prep = prepare_params(params)

    # Case 1: tiny batch (single grid step).
    B = 2
    x = jax.random.normal(ks[9], (B, num_ap), jnp.float32)
    mac = jax.random.randint(ks[10], (B, num_ap), 0, num_mac + 1, jnp.int32)
    out = jax.block_until_ready(wifi_cnn_forward(x, mac, prep, num_classes=num_classes))
    ref = jax.block_until_ready(_reference_forward(x, mac, params))
    assert out.shape == (B, num_classes)
    assert jnp.allclose(out, ref, atol=2e-2, rtol=2e-2), (out, ref)

    # Case 2: multi-block grid (explicit small tile, batch padded to tiles).
    B2 = 20
    x2 = jax.random.normal(ks[11], (B2, num_ap), jnp.float32)
    mac2 = jax.random.randint(ks[12], (B2, num_ap), 0, num_mac + 1, jnp.int32)
    out2 = jax.block_until_ready(
        wifi_cnn_forward(x2, mac2, prep, num_classes=num_classes, block_b=8))
    ref2 = jax.block_until_ready(_reference_forward(x2, mac2, params))
    assert out2.shape == (B2, num_classes)
    assert jnp.allclose(out2, ref2, atol=2e-2, rtol=2e-2), (out2, ref2)

    # Case 3: default tiling path with the >=2-step split (megacore-friendly).
    B3 = 40
    x3 = jax.random.normal(ks[13], (B3, num_ap), jnp.float32)
    mac3 = jax.random.randint(ks[14], (B3, num_ap), 0, num_mac + 1, jnp.int32)
    out3 = jax.block_until_ready(wifi_cnn_forward(x3, mac3, prep, num_classes=num_classes))
    ref3 = jax.block_until_ready(_reference_forward(x3, mac3, params))
    assert out3.shape == (B3, num_classes)
    assert jnp.allclose(out3, ref3, atol=2e-2, rtol=2e-2), (out3, ref3)

    print("KERNEL_OK")
</pallas_src>

<mosaic_0001>
module attributes {stable_mosaic.version = 11 : i64} {
  func.func @wifi_cnn_kernel(%arg0: i32, %arg1: memref<8x144xbf16, #tpu.memory_space<vmem>>, %arg2: memref<144x512xbf16, #tpu.memory_space<vmem>>, %arg3: memref<1x512xf32, #tpu.memory_space<vmem>>, %arg4: memref<512x1024xbf16, #tpu.memory_space<vmem>>, %arg5: memref<1x1024xf32, #tpu.memory_space<vmem>>, %arg6: memref<1024x128xbf16, #tpu.memory_space<vmem>>, %arg7: memref<1x128xf32, #tpu.memory_space<vmem>>, %arg8: memref<128x128xf32, #tpu.memory_space<vmem>>, %arg9: memref<1x128xf32, #tpu.memory_space<vmem>>, %arg10: memref<8x128xf32, #tpu.memory_space<vmem>>) attributes {dimension_semantics = [#tpu.dimension_semantics<parallel>], iteration_bounds = array<i64: 1>, scalar_prefetch = 0 : i64, scratch_operands = 0 : i64, tpu.core_type = #tpu.core_type<tc>, window_params = [{transform_indices = @transform_0, window_bounds = array<i64: 8, 144>}, {pipeline_mode = #tpu.pipeline_mode<synchronous>, transform_indices = @transform_1, window_bounds = array<i64: 144, 512>}, {pipeline_mode = #tpu.pipeline_mode<synchronous>, transform_indices = @transform_2, window_bounds = array<i64: 1, 512>}, {pipeline_mode = #tpu.pipeline_mode<synchronous>, transform_indices = @transform_3, window_bounds = array<i64: 512, 1024>}, {pipeline_mode = #tpu.pipeline_mode<synchronous>, transform_indices = @transform_4, window_bounds = array<i64: 1, 1024>}, {pipeline_mode = #tpu.pipeline_mode<synchronous>, transform_indices = @transform_5, window_bounds = array<i64: 1024, 128>}, {pipeline_mode = #tpu.pipeline_mode<synchronous>, transform_indices = @transform_6, window_bounds = array<i64: 1, 128>}, {pipeline_mode = #tpu.pipeline_mode<synchronous>, transform_indices = @transform_7, window_bounds = array<i64: 128, 128>}, {pipeline_mode = #tpu.pipeline_mode<synchronous>, transform_indices = @transform_8, window_bounds = array<i64: 1, 128>}, {transform_indices = @transform_9, window_bounds = array<i64: 8, 128>}]} {
    %c0 = arith.constant 0 : index
    %c0_0 = arith.constant 0 : index
    %0 = vector.load %arg1[%c0, %c0_0] : memref<8x144xbf16, #tpu.memory_space<vmem>>, vector<8x144xbf16>
    %c0_1 = arith.constant 0 : index
    %c0_2 = arith.constant 0 : index
    %1 = vector.load %arg2[%c0_1, %c0_2] : memref<144x512xbf16, #tpu.memory_space<vmem>>, vector<144x512xbf16>
    %cst = arith.constant dense<0.000000e+00> : vector<8x512xf32>
    %2 = tpu.matmul %0, %1, %cst {dimension_numbers = #tpu.dot_dimension_numbers<[1], [0], [0], [1], [0, 0, 1, 1], [], []>} : vector<8x144xbf16>, vector<144x512xbf16>, vector<8x512xf32> -> vector<8x512xf32>
    %c0_3 = arith.constant 0 : index
    %c0_4 = arith.constant 0 : index
    %3 = vector.load %arg3[%c0_3, %c0_4] : memref<1x512xf32, #tpu.memory_space<vmem>>, vector<1x512xf32>
    %4 = vector.broadcast %3 : vector<1x512xf32> to vector<8x512xf32>
    %5 = arith.addf %2, %4 : vector<8x512xf32>
    %cst_5 = arith.constant 0.000000e+00 : f32
    %6 = vector.broadcast %cst_5 : f32 to vector<8x512xf32>
    %7 = arith.maximumf %5, %6 : vector<8x512xf32>
    %8 = arith.truncf %7 : vector<8x512xf32> to vector<8x512xbf16>
    %c0_6 = arith.constant 0 : index
    %c0_7 = arith.constant 0 : index
    %9 = vector.load %arg4[%c0_6, %c0_7] : memref<512x1024xbf16, #tpu.memory_space<vmem>>, vector<512x1024xbf16>
    %cst_8 = arith.constant dense<0.000000e+00> : vector<8x1024xf32>
    %10 = tpu.matmul %8, %9, %cst_8 {dimension_numbers = #tpu.dot_dimension_numbers<[1], [0], [0], [1], [0, 0, 1, 1], [], []>} : vector<8x512xbf16>, vector<512x1024xbf16>, vector<8x1024xf32> -> vector<8x1024xf32>
    %c0_9 = arith.constant 0 : index
    %c0_10 = arith.constant 0 : index
    %11 = vector.load %arg5[%c0_9, %c0_10] : memref<1x1024xf32, #tpu.memory_space<vmem>>, vector<1x1024xf32>
    %12 = vector.broadcast %11 : vector<1x1024xf32> to vector<8x1024xf32>
    %13 = arith.addf %10, %12 : vector<8x1024xf32>
    %cst_11 = arith.constant 0.000000e+00 : f32
    %14 = vector.broadcast %cst_11 : f32 to vector<8x1024xf32>
    %15 = arith.maximumf %13, %14 : vector<8x1024xf32>
    %16 = arith.truncf %15 : vector<8x1024xf32> to vector<8x1024xbf16>
    %c0_12 = arith.constant 0 : index
    %c0_13 = arith.constant 0 : index
    %17 = vector.load %arg6[%c0_12, %c0_13] : memref<1024x128xbf16, #tpu.memory_space<vmem>>, vector<1024x128xbf16>
    %cst_14 = arith.constant dense<0.000000e+00> : vector<8x128xf32>
    %18 = tpu.matmul %16, %17, %cst_14 {dimension_numbers = #tpu.dot_dimension_numbers<[1], [0], [0], [1], [0, 0, 1, 1], [], []>} : vector<8x1024xbf16>, vector<1024x128xbf16>, vector<8x128xf32> -> vector<8x128xf32>
    %c0_15 = arith.constant 0 : index
    %c0_16 = arith.constant 0 : index
    %19 = vector.load %arg7[%c0_15, %c0_16] : memref<1x128xf32, #tpu.memory_space<vmem>>, vector<1x128xf32>
    %20 = vector.broadcast %19 : vector<1x128xf32> to vector<8x128xf32>
    %21 = arith.addf %18, %20 : vector<8x128xf32>
    %cst_17 = arith.constant 0.000000e+00 : f32
    %22 = vector.broadcast %cst_17 : f32 to vector<8x128xf32>
    %23 = arith.maximumf %21, %22 : vector<8x128xf32>
    %c0_18 = arith.constant 0 : index
    %c0_19 = arith.constant 0 : index
    %24 = vector.load %arg8[%c0_18, %c0_19] : memref<128x128xf32, #tpu.memory_space<vmem>>, vector<128x128xf32>
    %cst_20 = arith.constant dense<0.000000e+00> : vector<8x128xf32>
    %25 = tpu.matmul %23, %24, %cst_20 {dimension_numbers = #tpu.dot_dimension_numbers<[1], [0], [0], [1], [0, 0, 1, 1], [], []>} : vector<8x128xf32>, vector<128x128xf32>, vector<8x128xf32> -> vector<8x128xf32>
    %c0_21 = arith.constant 0 : index
    %c0_22 = arith.constant 0 : index
    %26 = vector.load %arg9[%c0_21, %c0_22] : memref<1x128xf32, #tpu.memory_space<vmem>>, vector<1x128xf32>
    %27 = vector.broadcast %26 : vector<1x128xf32> to vector<8x128xf32>
    %28 = arith.addf %25, %27 : vector<8x128xf32>
    %c0_23 = arith.constant 0 : index
    %c0_24 = arith.constant 0 : index
    %29 = vector.load %arg10[%c0_23, %c0_24] : memref<8x128xf32, #tpu.memory_space<vmem>>, vector<8x128xf32>
    tpu.vector_store %arg10[%c0_23, %c0_24], %28 {strides = array<i32>} : memref<8x128xf32, #tpu.memory_space<vmem>>, vector<8x128xf32>,
    return
  }
  func.func @transform_0(%arg0: i32) -> (i32, i32) {
    %c0_i32 = arith.constant 0 : i32
    %c0_i32_0 = arith.constant 0 : i32
    return %arg0, %c0_i32 : i32, i32
  }
  func.func @transform_1(%arg0: i32) -> (i32, i32) {
    %c0_i32 = arith.constant 0 : i32
    %c0_i32_0 = arith.constant 0 : i32
    %c0_i32_1 = arith.constant 0 : i32
    return %c0_i32, %c0_i32_0 : i32, i32
  }
  func.func @transform_2(%arg0: i32) -> (i32, i32) {
    %c0_i32 = arith.constant 0 : i32
    %c0_i32_0 = arith.constant 0 : i32
    %c0_i32_1 = arith.constant 0 : i32
    return %c0_i32, %c0_i32_0 : i32, i32
  }
  func.func @transform_3(%arg0: i32) -> (i32, i32) {
    %c0_i32 = arith.constant 0 : i32
    %c0_i32_0 = arith.constant 0 : i32
    %c0_i32_1 = arith.constant 0 : i32
    return %c0_i32, %c0_i32_0 : i32, i32
  }
  func.func @transform_4(%arg0: i32) -> (i32, i32) {
    %c0_i32 = arith.constant 0 : i32
    %c0_i32_0 = arith.constant 0 : i32
    %c0_i32_1 = arith.constant 0 : i32
    return %c0_i32, %c0_i32_0 : i32, i32
  }
  func.func @transform_5(%arg0: i32) -> (i32, i32) {
    %c0_i32 = arith.constant 0 : i32
    %c0_i32_0 = arith.constant 0 : i32
    %c0_i32_1 = arith.constant 0 : i32
    return %c0_i32, %c0_i32_0 : i32, i32
  }
  func.func @transform_6(%arg0: i32) -> (i32, i32) {
    %c0_i32 = arith.constant 0 : i32
    %c0_i32_0 = arith.constant 0 : i32
    %c0_i32_1 = arith.constant 0 : i32
    return %c0_i32, %c0_i32_0 : i32, i32
  }
  func.func @transform_7(%arg0: i32) -> (i32, i32) {
    %c0_i32 = arith.constant 0 : i32
    %c0_i32_0 = arith.constant 0 : i32
    %c0_i32_1 = arith.constant 0 : i32
    return %c0_i32, %c0_i32_0 : i32, i32
  }
  func.func @transform_8(%arg0: i32) -> (i32, i32) {
    %c0_i32 = arith.constant 0 : i32
    %c0_i32_0 = arith.constant 0 : i32
    %c0_i32_1 = arith.constant 0 : i32
    return %c0_i32, %c0_i32_0 : i32, i32
  }
  func.func @transform_9(%arg0: i32) -> (i32, i32) {
    %c0_i32 = arith.constant 0 : i32
    %c0_i32_0 = arith.constant 0 : i32
    return %arg0, %c0_i32 : i32, i32
  }
}

</mosaic_0001>

<llo_original>
// kernel: wifi_cnn_forward.1
$region0: #{wifi_cnn_forward.1}
  #allocation0 [shape = 'u32[]', space=smem, size = 0x4, offset = 0x4, fixed_abs, tag = 'smem constant byte address 0x4 - core index']
  #allocation1 [shape = 'u32[144,128]{1,0:T(1,128)}', space=vmem, size = 0x12000, scoped, tag = 'internal scratch']
  %s0 = inlined_call_operand.vmem [shape: bf16[8,144], index: 0, kind: input, shape index: {}]
  %s1 = inlined_call_operand.vmem [shape: bf16[144,512], index: 1, kind: input, shape index: {}]
  %s2 = inlined_call_operand.vmem [shape: f32[1,512], index: 2, kind: input, shape index: {}]
  %s3 = inlined_call_operand.hbm [shape: bf16[512,1024], index: 3, kind: input, shape index: {}]
  %s4 = inlined_call_operand.vmem [shape: f32[1,1024], index: 4, kind: input, shape index: {}]
  %s5 = inlined_call_operand.hbm [shape: bf16[1024,128], index: 5, kind: input, shape index: {}]
  %s6 = inlined_call_operand.vmem [shape: f32[1,128], index: 6, kind: input, shape index: {}]
  %s7 = inlined_call_operand.hbm [shape: f32[128,128], index: 7, kind: input, shape index: {}]
  %s8 = inlined_call_operand.vmem [shape: f32[1,128], index: 8, kind: input, shape index: {}]
  %s9 = inlined_call_operand.vmem [shape: f32[8,128], index: 9, kind: output, shape index: {}]
  %s10 = sld [smem:[#allocation0]]
  $region58: #{wifi_cnn_forward.1} parent=0
    _
  %s12 = ssub.s32 1, %s10
  %s13 = scalar_select 0, %s12, %s10
  $region1: #{wifi_cnn_forward.1} parent=0
    #allocation2 [shape = 'u8[1048576]{0}', space=vmem, size = 0x100000, scoped, tag = 'input window, operand 3, single buffered']
    #allocation3 [shape = 's32[1]{0}', space=sflag, size = 0x4, scoped, tag = 'scoped memory for wifi_cnn_forward.1']
    #allocation4 [shape = 'u8[262144]{0}', space=vmem, size = 0x40000, scoped, tag = 'input window, operand 5, single buffered']
    #allocation5 [shape = 's32[1]{0}', space=sflag, size = 0x4, scoped, tag = 'scoped memory for wifi_cnn_forward.1']
    #allocation6 [shape = 'u8[65536]{0}', space=vmem, size = 0x10000, scoped, tag = 'input window, operand 7, single buffered']
    %14 = vsyncpa [#allocation3], 0
    %15 = vsyncpa [#allocation5], 0
    // Predicated region
    $region2: #{wifi_cnn_forward.1} parent=1 // pred_check
      _
    $region3: #{wifi_cnn_forward.1} parent=1 // pred_check_branch
      %17 = sbr.rel (0) target = $region5
    $region4: #{wifi_cnn_forward.1} parent=1 // pred_region
      _
    $region5: #{wifi_cnn_forward.1} parent=1 // pred_fallthru
      _
    // Predicated region
    $region6: #{wifi_cnn_forward.1} parent=1 // pred_check
      _
    $region7: #{wifi_cnn_forward.1} parent=1 // pred_check_branch
      %19 = sbr.rel (0) target = $region9
    $region8: #{wifi_cnn_forward.1} parent=1 // pred_region
      _
    $region9: #{wifi_cnn_forward.1} parent=1 // pred_fallthru
      _
    // Predicated region
    $region10: #{wifi_cnn_forward.1} parent=1 // pred_check
      _
    $region11: #{wifi_cnn_forward.1} parent=1 // pred_check_branch
      %21 = sbr.rel (0) target = $region13
    $region12: #{wifi_cnn_forward.1} parent=1 // pred_region
      _
    $region13: #{wifi_cnn_forward.1} parent=1 // pred_fallthru
      _
    // Predicated region
    $region14: #{wifi_cnn_forward.1} parent=1 // pred_check
      _
    $region15: #{wifi_cnn_forward.1} parent=1 // pred_check_branch
      %23 = sbr.rel (0) target = $region17
    $region16: #{wifi_cnn_forward.1} parent=1 // pred_region
      %s25 = ssub.s32 32768, 32768
      %26 = vsyncadd [#allocation3], %s25
      %s27 = sshll.u32 [#allocation2], 4
      %s28 = int_to_ptr.vmem [resolvable:$true] %s27
      %33 = dma.hbm_to_vmem [thread:$0]  %s3, 32768, %s28, [#allocation3], 512, 512, 32
    $region17: #{wifi_cnn_forward.1} parent=1 // pred_fallthru
      _
    // Predicated region
    $region18: #{wifi_cnn_forward.1} parent=1 // pred_check
      _
    $region19: #{wifi_cnn_forward.1} parent=1 // pred_check_branch
      %35 = sbr.rel (0) target = $region21
    $region20: #{wifi_cnn_forward.1} parent=1 // pred_region
      _
    $region21: #{wifi_cnn_forward.1} parent=1 // pred_fallthru
      _
    // Predicated region
    $region22: #{wifi_cnn_forward.1} parent=1 // pred_check
      _
    $region23: #{wifi_cnn_forward.1} parent=1 // pred_check_branch
      %37 = sbr.rel (0) target = $region25
    $region24: #{wifi_cnn_forward.1} parent=1 // pred_region
      %s39 = ssub.s32 8192, 8192
      %40 = vsyncadd [#allocation5], %s39
      %s41 = sshll.u32 [#allocation4], 4
      %s42 = int_to_ptr.vmem [resolvable:$true] %s41
      %47 = dma.hbm_to_vmem [thread:$0]  %s5, 8192, %s42, [#allocation5], 64, 64, 4
    $region25: #{wifi_cnn_forward.1} parent=1 // pred_fallthru
      _
    // Predicated region
    $region26: #{wifi_cnn_forward.1} parent=1 // pred_check
      _
    $region27: #{wifi_cnn_forward.1} parent=1 // pred_check_branch
      %49 = sbr.rel (0) target = $region29
    $region28: #{wifi_cnn_forward.1} parent=1 // pred_region
      _
    $region29: #{wifi_cnn_forward.1} parent=1 // pred_fallthru
      _
    // Predicated region
    $region30: #{wifi_cnn_forward.1} parent=1 // pred_check
      _
    $region31: #{wifi_cnn_forward.1} parent=1 // pred_check_branch
      %51 = sbr.rel (0) target = $region33
    $region32: #{wifi_cnn_forward.1} parent=1 // pred_region
      %s53 = ssub.s32 2048, 2048
      %54 = vsyncadd [#allocation5], %s53
      %s55 = sshll.u32 [#allocation6], 4
      %s56 = int_to_ptr.vmem [resolvable:$true] %s55
      %61 = dma.hbm_to_vmem [thread:$0]  %s7, 2048, %s56, [#allocation5], 128, 128, 8
    $region33: #{wifi_cnn_forward.1} parent=1 // pred_fallthru
      _
    // Predicated region
    $region34: #{wifi_cnn_forward.1} parent=1 // pred_check
      _
    $region35: #{wifi_cnn_forward.1} parent=1 // pred_check_branch
      %63 = sbr.rel (0) target = $region37
    $region36: #{wifi_cnn_forward.1} parent=1 // pred_region
      _
    $region37: #{wifi_cnn_forward.1} parent=1 // pred_fallthru
      _
    // Predicated region
    $region38: #{wifi_cnn_forward.1} parent=1 // pred_check
      _
    $region39: #{wifi_cnn_forward.1} parent=1 // pred_check_branch
      %65 = sbr.rel (0) target = $region41
    $region40: #{wifi_cnn_forward.1} parent=1 // pred_region
      %66 = dma.done [#allocation3], 32768
    $region41: #{wifi_cnn_forward.1} parent=1 // pred_fallthru
      _
    // Predicated region
    $region42: #{wifi_cnn_forward.1} parent=1 // pred_check
      _
    $region43: #{wifi_cnn_forward.1} parent=1 // pred_check_branch
      %68 = sbr.rel (0) target = $region45
    $region44: #{wifi_cnn_forward.1} parent=1 // pred_region
      %69 = dma.done [#allocation5], 8192
    $region45: #{wifi_cnn_forward.1} parent=1 // pred_fallthru
      _
    // Predicated region
    $region46: #{wifi_cnn_forward.1} parent=1 // pred_check
      _
    $region47: #{wifi_cnn_forward.1} parent=1 // pred_check_branch
      %71 = sbr.rel (0) target = $region49
    $region48: #{wifi_cnn_forward.1} parent=1 // pred_region
      %72 = dma.done [#allocation5], 2048
    $region49: #{wifi_cnn_forward.1} parent=1 // pred_fallthru
      _
    %v74 = vld [vmem:[%s0] sm:$0xff]
    %v75 = vld [vmem:[%s1] sm:$0xff]
    %v76 = vld [vmem:[%s1 + $0x8] sm:$0xff]
    %v77 = vld [vmem:[%s1 + $0x10] sm:$0xff]
    %v78 = vld [vmem:[%s1 + $0x18] sm:$0xff]
    %v79 = vld [vmem:[%s1 + $0x20] sm:$0xff]
    %v80 = vld [vmem:[%s1 + $0x28] sm:$0xff]
    %v81 = vld [vmem:[%s1 + $0x30] sm:$0xff]
    %v82 = vld [vmem:[%s1 + $0x38] sm:$0xff]
    %v83 = vld [vmem:[%s1 + $0x40] sm:$0xff]
    %v84 = vld [vmem:[%s1 + $0x48] sm:$0xff]
    %v85 = vld [vmem:[%s1 + $0x50] sm:$0xff]
    %v86 = vld [vmem:[%s1 + $0x58] sm:$0xff]
    %v87 = vld [vmem:[%s1 + $0x60] sm:$0xff]
    %v88 = vld [vmem:[%s1 + $0x68] sm:$0xff]
    %v89 = vld [vmem:[%s1 + $0x70] sm:$0xff]
    %v90 = vld [vmem:[%s1 + $0x78] sm:$0xff]
    %v91 = vld [vmem:[%s1 + $0x80] sm:$0xff]
    %v92 = vld [vmem:[%s1 + $0x88] sm:$0xff]
    %v93 = vld [vmem:[%s1 + $0x90] sm:$0xff]
    %v94 = vld [vmem:[%s1 + $0x98] sm:$0xff]
    %v95 = vld [vmem:[%s1 + $0xa0] sm:$0xff]
    %v96 = vld [vmem:[%s1 + $0xa8] sm:$0xff]
    %v97 = vld [vmem:[%s1 + $0xb0] sm:$0xff]
    %v98 = vld [vmem:[%s1 + $0xb8] sm:$0xff]
    %v99 = vld [vmem:[%s1 + $0xc0] sm:$0xff]
    %v100 = vld [vmem:[%s1 + $0xc8] sm:$0xff]
    %v101 = vld [vmem:[%s1 + $0xd0] sm:$0xff]
    %v102 = vld [vmem:[%s1 + $0xd8] sm:$0xff]
    %v103 = vld [vmem:[%s1 + $0xe0] sm:$0xff]
    %v104 = vld [vmem:[%s1 + $0xe8] sm:$0xff]
    %v105 = vld [vmem:[%s1 + $0xf0] sm:$0xff]
    %v106 = vld [vmem:[%s1 + $0xf8] sm:$0xff]
    %v107 = vld [vmem:[%s1 + $0x100] sm:$0xff]
    %v108 = vld [vmem:[%s1 + $0x108] sm:$0xff]
    %v109 = vld [vmem:[%s1 + $0x110] sm:$0xff]
    %v110 = vld [vmem:[%s1 + $0x118] sm:$0xff]
    %v111 = vld [vmem:[%s2] sm:$0xf]
    %v113 = vlaneseq
    %v114 = vshrl.u32 %v113, 7
    %v115 = vsub.s32 0, %v114
    %v116 = vrot.slane %v111, %v115
    %v117 = vlaneseq
    %v118 = vshrl.u32 %v117, 7
    %v119 = vsub.s32 1, %v118
    %v120 = vrot.slane %v111, %v119
    %v121 = vlaneseq
    %v122 = vshrl.u32 %v121, 7
    %v123 = vsub.s32 2, %v122
    %v124 = vrot.slane %v111, %v123
    %v125 = vlaneseq
    %v126 = vshrl.u32 %v125, 7
    %v127 = vsub.s32 3, %v126
    %v128 = vrot.slane %v111, %v127
    %v134 = vunpack.c.l.b16 %v74
    %v135 = vunpack.c.h.b16 %v74
    %v136 = vpack.c.b16 %v134, %v134
    %v137 = vpack.c.b16 %v135, %v135
    %v175 = vunpack.c.l.b16 %v75
    %v176 = vunpack.c.h.b16 %v75
    %v177 = vunpack.c.l.b16 %v76
    %v178 = vunpack.c.h.b16 %v76
    %v179 = vunpack.c.l.b16 %v77
    %v180 = vunpack.c.h.b16 %v77
    %v181 = vunpack.c.l.b16 %v78
    %v182 = vunpack.c.h.b16 %v78
    %v183 = vunpack.c.l.b16 %v79
    %v184 = vunpack.c.h.b16 %v79
    %v185 = vunpack.c.l.b16 %v80
    %v186 = vunpack.c.h.b16 %v80
    %v187 = vunpack.c.l.b16 %v81
    %v188 = vunpack.c.h.b16 %v81
    %v189 = vunpack.c.l.b16 %v82
    %v190 = vunpack.c.h.b16 %v82
    %v191 = vunpack.c.l.b16 %v83
    %v192 = vunpack.c.h.b16 %v83
    %v193 = vunpack.c.l.b16 %v84
    %v194 = vunpack.c.h.b16 %v84
    %v195 = vunpack.c.l.b16 %v85
    %v196 = vunpack.c.h.b16 %v85
    %v197 = vunpack.c.l.b16 %v86
    %v198 = vunpack.c.h.b16 %v86
    %v199 = vunpack.c.l.b16 %v87
    %v200 = vunpack.c.h.b16 %v87
    %v201 = vunpack.c.l.b16 %v88
    %v202 = vunpack.c.h.b16 %v88
    %v203 = vunpack.c.l.b16 %v89
    %v204 = vunpack.c.h.b16 %v89
    %v205 = vunpack.c.l.b16 %v90
    %v206 = vunpack.c.h.b16 %v90
    %v207 = vunpack.c.l.b16 %v91
    %v208 = vunpack.c.h.b16 %v91
    %v209 = vunpack.c.l.b16 %v92
    %v210 = vunpack.c.h.b16 %v92
    %v211 = vunpack.c.l.b16 %v93
    %v212 = vunpack.c.h.b16 %v93
    %v213 = vunpack.c.l.b16 %v94
    %v214 = vunpack.c.h.b16 %v94
    %v215 = vunpack.c.l.b16 %v95
    %v216 = vunpack.c.h.b16 %v95
    %v217 = vunpack.c.l.b16 %v96
    %v218 = vunpack.c.h.b16 %v96
    %v219 = vunpack.c.l.b16 %v97
    %v220 = vunpack.c.h.b16 %v97
    %v221 = vunpack.c.l.b16 %v98
    %v222 = vunpack.c.h.b16 %v98
    %v223 = vunpack.c.l.b16 %v99
    %v224 = vunpack.c.h.b16 %v99
    %v225 = vunpack.c.l.b16 %v100
    %v226 = vunpack.c.h.b16 %v100
    %v227 = vunpack.c.l.b16 %v101
    %v228 = vunpack.c.h.b16 %v101
    %v229 = vunpack.c.l.b16 %v102
    %v230 = vunpack.c.h.b16 %v102
    %v231 = vunpack.c.l.b16 %v103
    %v232 = vunpack.c.h.b16 %v103
    %v233 = vunpack.c.l.b16 %v104
    %v234 = vunpack.c.h.b16 %v104
    %v235 = vunpack.c.l.b16 %v105
    %v236 = vunpack.c.h.b16 %v105
    %v237 = vunpack.c.l.b16 %v106
    %v238 = vunpack.c.h.b16 %v106
    %v239 = vunpack.c.l.b16 %v107
    %v240 = vunpack.c.h.b16 %v107
    %v241 = vunpack.c.l.b16 %v108
    %v242 = vunpack.c.h.b16 %v108
    %v243 = vunpack.c.l.b16 %v109
    %v244 = vunpack.c.h.b16 %v109
    %v245 = vunpack.c.l.b16 %v110
    %v246 = vunpack.c.h.b16 %v110
    %v247 = vpack.c.b16 %v179, %v175
    %v248 = vpack.c.b16 %v180, %v176
    %v249 = vpack.c.b16 %v181, %v177
    %v250 = vpack.c.b16 %v182, %v178
    %v251 = vpack.c.b16 %v187, %v183
    %v252 = vpack.c.b16 %v188, %v184
    %v253 = vpack.c.b16 %v189, %v185
    %v254 = vpack.c.b16 %v190, %v186
    %v255 = vpack.c.b16 %v195, %v191
    %v256 = vpack.c.b16 %v196, %v192
    %v257 = vpack.c.b16 %v197, %v193
    %v258 = vpack.c.b16 %v198, %v194
    %v259 = vpack.c.b16 %v203, %v199
    %v260 = vpack.c.b16 %v204, %v200
    %v261 = vpack.c.b16 %v205, %v201
    %v262 = vpack.c.b16 %v206, %v202
    %v263 = vpack.c.b16 %v211, %v207
    %v264 = vpack.c.b16 %v212, %v208
    %v265 = vpack.c.b16 %v213, %v209
    %v266 = vpack.c.b16 %v214, %v210
    %v267 = vpack.c.b16 %v219, %v215
    %v268 = vpack.c.b16 %v220, %v216
    %v269 = vpack.c.b16 %v221, %v217
    %v270 = vpack.c.b16 %v222, %v218
    %v271 = vpack.c.b16 %v227, %v223
    %v272 = vpack.c.b16 %v228, %v224
    %v273 = vpack.c.b16 %v229, %v225
    %v274 = vpack.c.b16 %v230, %v226
    %v275 = vpack.c.b16 %v235, %v231
    %v276 = vpack.c.b16 %v236, %v232
    %v277 = vpack.c.b16 %v237, %v233
    %v278 = vpack.c.b16 %v238, %v234
    %v279 = vpack.c.b16 %v243, %v239
    %v280 = vpack.c.b16 %v244, %v240
    %v281 = vpack.c.b16 %v245, %v241
    %v282 = vpack.c.b16 %v246, %v242
    %vm319 = vcmask 130048
    %v321 = vsel %vm319, %v137, 0
    %323 = vmatprep.subr.bf16.mxu0 %v248
    %324 = vmatpush1.bf16.msra.mxu0 %v247
    %325 = vmatprep.subr.bf16.mxu0 %v252
    %326 = vmatpush1.bf16.msra.mxu0 %v251
    %327 = vmatprep.subr.bf16.mxu0 %v256
    %328 = vmatpush1.bf16.msra.mxu0 %v255
    %329 = vmatprep.subr.bf16.mxu0 %v260
    %330 = vmatpush1.bf16.msra.mxu0 %v259
    %331 = vmatprep.subr.bf16.mxu0 %v264
    %332 = vmatpush1.bf16.msra.mxu0 %v263
    %333 = vmatprep.subr.bf16.mxu0 %v268
    %334 = vmatpush1.bf16.msra.mxu0 %v267
    %335 = vmatprep.subr.bf16.mxu0 %v272
    %336 = vmatpush1.bf16.msra.mxu0 %v271
    %337 = vmatprep.subr.bf16.mxu0 %v276
    %338 = vmatpush1.bf16.msra.mxu0 %v275
    %339 = vmatprep.subr.bf16.mxu0 %v280
    %340 = vmatpush1.bf16.msra.mxu0 %v279
    %341 = vmatprep.subr.bf16.mxu0 0
    %342 = vmatpush1.bf16.msra.mxu0 0
    %343 = vmatprep.subr.bf16.mxu0 0
    %344 = vmatpush1.bf16.msra.mxu0 0
    %345 = vmatprep.subr.bf16.mxu0 0
    %346 = vmatpush1.bf16.msra.mxu0 0
    %347 = vmatprep.subr.bf16.mxu0 0
    %348 = vmatpush1.bf16.msra.mxu0 0
    %349 = vmatprep.subr.bf16.mxu0 0
    %350 = vmatpush1.bf16.msra.mxu0 0
    %351 = vmatprep.subr.bf16.mxu0 0
    %352 = vmatpush1.bf16.msra.mxu0 0
    %353 = vmatprep.subr.bf16.mxu0 0
    %354 = vmatpush1.bf16.msra.mxu0 0
    %355 = vmatprep.mubr.bf16.mxu0 %v321
    %356 = vmatmul.mubr.bf16.gmra.mrb[0].mxu0 %v136
    %v357 = vpop.f32.mrb[0].mxu0
    %v358 = vadd.f32 %v116, %v357
    %v359 = vpop.f32.mrb[0].mxu0
    %v360 = vadd.f32 %v120, %v359
    %v361 = vpop.f32.mrb[0].mxu0
    %v362 = vpop.f32.mrb[0].mxu0
    %363 = vdwg.mxu0
    %364 = vmatprep.subr.bf16.mxu0 %v250
    %365 = vmatpush1.bf16.msra.mxu0 %v249
    %366 = vmatprep.subr.bf16.mxu0 %v254
    %367 = vmatpush1.bf16.msra.mxu0 %v253
    %368 = vmatprep.subr.bf16.mxu0 %v258
    %369 = vmatpush1.bf16.msra.mxu0 %v257
    %370 = vmatprep.subr.bf16.mxu0 %v262
    %371 = vmatpush1.bf16.msra.mxu0 %v261
    %372 = vmatprep.subr.bf16.mxu0 %v266
    %373 = vmatpush1.bf16.msra.mxu0 %v265
    %374 = vmatprep.subr.bf16.mxu0 %v270
    %375 = vmatpush1.bf16.msra.mxu0 %v269
    %376 = vmatprep.subr.bf16.mxu0 %v274
    %377 = vmatpush1.bf16.msra.mxu0 %v273
    %378 = vmatprep.subr.bf16.mxu0 %v278
    %379 = vmatpush1.bf16.msra.mxu0 %v277
    %380 = vmatprep.subr.bf16.mxu0 %v282
    %381 = vmatpush1.bf16.msra.mxu0 %v281
    %382 = vmatprep.subr.bf16.mxu0 0
    %383 = vmatpush1.bf16.msra.mxu0 0
    %384 = vmatprep.subr.bf16.mxu0 0
    %385 = vmatpush1.bf16.msra.mxu0 0
    %386 = vmatprep.subr.bf16.mxu0 0
    %387 = vmatpush1.bf16.msra.mxu0 0
    %388 = vmatprep.subr.bf16.mxu0 0
    %389 = vmatpush1.bf16.msra.mxu0 0
    %390 = vmatprep.subr.bf16.mxu0 0
    %391 = vmatpush1.bf16.msra.mxu0 0
    %392 = vmatprep.subr.bf16.mxu0 0
    %393 = vmatpush1.bf16.msra.mxu0 0
    %394 = vmatprep.subr.bf16.mxu0 0
    %395 = vmatpush1.bf16.msra.mxu0 0
    %396 = vmatprep.mubr.bf16.mxu0 %v321
    %397 = vmatmul.mubr.bf16.gmra.mrb[0].mxu0 %v136
    %v398 = vpop.f32.mrb[0].mxu0
    %v399 = vadd.f32 %v124, %v398
    %v400 = vpop.f32.mrb[0].mxu0
    %v401 = vadd.f32 %v128, %v400
    %v402 = vpop.f32.mrb[0].mxu0
    %v403 = vpop.f32.mrb[0].mxu0
    %404 = vdwg.mxu0
    %v405 = vmax.f32 %v358, 0.0
    %v406 = vmax.f32 %v360, 0.0
    %v407 = vmax.f32 %v399, 0.0
    %v408 = vmax.f32 %v401, 0.0
    %v409 = vpack.c.bf16 %v405, %v405
    %v410 = vpack.c.bf16 %v406, %v406
    %v411 = vpack.c.bf16 %v407, %v407
    %v412 = vpack.c.bf16 %v408, %v408
    %v413 = vld [vmem:[#allocation2] sm:$0xff]
    %v414 = vld [vmem:[#allocation2 + $0x8] sm:$0xff]
    %v415 = vld [vmem:[#allocation2 + $0x10] sm:$0xff]
    %v416 = vld [vmem:[#allocation2 + $0x18] sm:$0xff]
    %v417 = vld [vmem:[#allocation2 + $0x20] sm:$0xff]
    %v418 = vld [vmem:[#allocation2 + $0x28] sm:$0xff]
    %v419 = vld [vmem:[#allocation2 + $0x30] sm:$0xff]
    %v420 = vld [vmem:[#allocation2 + $0x38] sm:$0xff]
    %v421 = vld [vmem:[#allocation2 + $0x40] sm:$0xff]
    %v422 = vld [vmem:[#allocation2 + $0x48] sm:$0xff]
    %v423 = vld [vmem:[#allocation2 + $0x50] sm:$0xff]
    %v424 = vld [vmem:[#allocation2 + $0x58] sm:$0xff]
    %v425 = vld [vmem:[#allocation2 + $0x60] sm:$0xff]
    %v426 = vld [vmem:[#allocation2 + $0x68] sm:$0xff]
    %v427 = vld [vmem:[#allocation2 + $0x70] sm:$0xff]
    %v428 = vld [vmem:[#allocation2 + $0x78] sm:$0xff]
    %v429 = vld [vmem:[#allocation2 + $0x80] sm:$0xff]
    %v430 = vld [vmem:[#allocation2 + $0x88] sm:$0xff]
    %v431 = vld [vmem:[#allocation2 + $0x90] sm:$0xff]
    %v432 = vld [vmem:[#allocation2 + $0x98] sm:$0xff]
    %v433 = vld [vmem:[#allocation2 + $0xa0] sm:$0xff]
    %v434 = vld [vmem:[#allocation2 + $0xa8] sm:$0xff]
    %v435 = vld [vmem:[#allocation2 + $0xb0] sm:$0xff]
    %v436 = vld [vmem:[#allocation2 + $0xb8] sm:$0xff]
    %v437 = vld [vmem:[#allocation2 + $0xc0] sm:$0xff]
    %v438 = vld [vmem:[#allocation2 + $0xc8] sm:$0xff]
    %v439 = vld [vmem:[#allocation2 + $0xd0] sm:$0xff]
    %v440 = vld [vmem:[#allocation2 + $0xd8] sm:$0xff]
    %v441 = vld [vmem:[#allocation2 + $0xe0] sm:$0xff]
    %v442 = vld [vmem:[#allocation2 + $0xe8] sm:$0xff]
    %v443 = vld [vmem:[#allocation2 + $0xf0] sm:$0xff]
    %v444 = vld [vmem:[#allocation2 + $0xf8] sm:$0xff]
    %v445 = vld [vmem:[#allocation2 + $0x100] sm:$0xff]
    %v446 = vld [vmem:[#allocation2 + $0x108] sm:$0xff]
    %v447 = vld [vmem:[#allocation2 + $0x110] sm:$0xff]
    %v448 = vld [vmem:[#allocation2 + $0x118] sm:$0xff]
    %v449 = vld [vmem:[#allocation2 + $0x120] sm:$0xff]
    %v450 = vld [vmem:[#allocation2 + $0x128] sm:$0xff]
    %v451 = vld [vmem:[#allocation2 + $0x130] sm:$0xff]
    %v452 = vld [vmem:[#allocation2 + $0x138] sm:$0xff]
    %v453 = vld [vmem:[#allocation2 + $0x140] sm:$0xff]
    %v454 = vld [vmem:[#allocation2 + $0x148] sm:$0xff]
    %v455 = vld [vmem:[#allocation2 + $0x150] sm:$0xff]
    %v456 = vld [vmem:[#allocation2 + $0x158] sm:$0xff]
    %v457 = vld [vmem:[#allocation2 + $0x160] sm:$0xff]
    %v458 = vld [vmem:[#allocation2 + $0x168] sm:$0xff]
    %v459 = vld [vmem:[#allocation2 + $0x170] sm:$0xff]
    %v460 = vld [vmem:[#allocation2 + $0x178] sm:$0xff]
    %v461 = vld [vmem:[#allocation2 + $0x180] sm:$0xff]
    %v462 = vld [vmem:[#allocation2 + $0x188] sm:$0xff]
    %v463 = vld [vmem:[#allocation2 + $0x190] sm:$0xff]
    %v464 = vld [vmem:[#allocation2 + $0x198] sm:$0xff]
    %v465 = vld [vmem:[#allocation2 + $0x1a0] sm:$0xff]
    %v466 = vld [vmem:[#allocation2 + $0x1a8] sm:$0xff]
    %v467 = vld [vmem:[#allocation2 + $0x1b0] sm:$0xff]
    %v468 = vld [vmem:[#allocation2 + $0x1b8] sm:$0xff]
    %v469 = vld [vmem:[#allocation2 + $0x1c0] sm:$0xff]
    %v470 = vld [vmem:[#allocation2 + $0x1c8] sm:$0xff]
    %v471 = vld [vmem:[#allocation2 + $0x1d0] sm:$0xff]
    %v472 = vld [vmem:[#allocation2 + $0x1d8] sm:$0xff]
    %v473 = vld [vmem:[#allocation2 + $0x1e0] sm:$0xff]
    %v474 = vld [vmem:[#allocation2 + $0x1e8] sm:$0xff]
    %v475 = vld [vmem:[#allocation2 + $0x1f0] sm:$0xff]
    %v476 = vld [vmem:[#allocation2 + $0x1f8] sm:$0xff]
    %v477 = vld [vmem:[#allocation2 + $0x200] sm:$0xff]
    %v478 = vld [vmem:[#allocation2 + $0x208] sm:$0xff]
    %v479 = vld [vmem:[#allocation2 + $0x210] sm:$0xff]
    %v480 = vld [vmem:[#allocation2 + $0x218] sm:$0xff]
    %v481 = vld [vmem:[#allocation2 + $0x220] sm:$0xff]
    %v482 = vld [vmem:[#allocation2 + $0x228] sm:$0xff]
    %v483 = vld [vmem:[#allocation2 + $0x230] sm:$0xff]
    %v484 = vld [vmem:[#allocation2 + $0x238] sm:$0xff]
    %v485 = vld [vmem:[#allocation2 + $0x240] sm:$0xff]
    %v486 = vld [vmem:[#allocation2 + $0x248] sm:$0xff]
    %v487 = vld [vmem:[#allocation2 + $0x250] sm:$0xff]
    %v488 = vld [vmem:[#allocation2 + $0x258] sm:$0xff]
    %v489 = vld [vmem:[#allocation2 + $0x260] sm:$0xff]
    %v490 = vld [vmem:[#allocation2 + $0x268] sm:$0xff]
    %v491 = vld [vmem:[#allocation2 + $0x270] sm:$0xff]
    %v492 = vld [vmem:[#allocation2 + $0x278] sm:$0xff]
    %v493 = vld [vmem:[#allocation2 + $0x280] sm:$0xff]
    %v494 = vld [vmem:[#allocation2 + $0x288] sm:$0xff]
    %v495 = vld [vmem:[#allocation2 + $0x290] sm:$0xff]
    %v496 = vld [vmem:[#allocation2 + $0x298] sm:$0xff]
    %v497 = vld [vmem:[#allocation2 + $0x2a0] sm:$0xff]
    %v498 = vld [vmem:[#allocation2 + $0x2a8] sm:$0xff]
    %v499 = vld [vmem:[#allocation2 + $0x2b0] sm:$0xff]
    %v500 = vld [vmem:[#allocation2 + $0x2b8] sm:$0xff]
    %v501 = vld [vmem:[#allocation2 + $0x2c0] sm:$0xff]
    %v502 = vld [vmem:[#allocation2 + $0x2c8] sm:$0xff]
    %v503 = vld [vmem:[#allocation2 + $0x2d0] sm:$0xff]
    %v504 = vld [vmem:[#allocation2 + $0x2d8] sm:$0xff]
    %v505 = vld [vmem:[#allocation2 + $0x2e0] sm:$0xff]
    %v506 = vld [vmem:[#allocation2 + $0x2e8] sm:$0xff]
    %v507 = vld [vmem:[#allocation2 + $0x2f0] sm:$0xff]
    %v508 = vld [vmem:[#allocation2 + $0x2f8] sm:$0xff]
    %v509 = vld [vmem:[#allocation2 + $0x300] sm:$0xff]
    %v510 = vld [vmem:[#allocation2 + $0x308] sm:$0xff]
    %v511 = vld [vmem:[#allocation2 + $0x310] sm:$0xff]
    %v512 = vld [vmem:[#allocation2 + $0x318] sm:$0xff]
    %v513 = vld [vmem:[#allocation2 + $0x320] sm:$0xff]
    %v514 = vld [vmem:[#allocation2 + $0x328] sm:$0xff]
    %v515 = vld [vmem:[#allocation2 + $0x330] sm:$0xff]
    %v516 = vld [vmem:[#allocation2 + $0x338] sm:$0xff]
    %v517 = vld [vmem:[#allocation2 + $0x340] sm:$0xff]
    %v518 = vld [vmem:[#allocation2 + $0x348] sm:$0xff]
    %v519 = vld [vmem:[#allocation2 + $0x350] sm:$0xff]
    %v520 = vld [vmem:[#allocation2 + $0x358] sm:$0xff]
    %v521 = vld [vmem:[#allocation2 + $0x360] sm:$0xff]
    %v522 = vld [vmem:[#allocation2 + $0x368] sm:$0xff]
    %v523 = vld [vmem:[#allocation2 + $0x370] sm:$0xff]
    %v524 = vld [vmem:[#allocation2 + $0x378] sm:$0xff]
    %v525 = vld [vmem:[#allocation2 + $0x380] sm:$0xff]
    %v526 = vld [vmem:[#allocation2 + $0x388] sm:$0xff]
    %v527 = vld [vmem:[#allocation2 + $0x390] sm:$0xff]
    %v528 = vld [vmem:[#allocation2 + $0x398] sm:$0xff]
    %v529 = vld [vmem:[#allocation2 + $0x3a0] sm:$0xff]
    %v530 = vld [vmem:[#allocation2 + $0x3a8] sm:$0xff]
    %v531 = vld [vmem:[#allocation2 + $0x3b0] sm:$0xff]
    %v532 = vld [vmem:[#allocation2 + $0x3b8] sm:$0xff]
    %v533 = vld [vmem:[#allocation2 + $0x3c0] sm:$0xff]
    %v534 = vld [vmem:[#allocation2 + $0x3c8] sm:$0xff]
    %v535 = vld [vmem:[#allocation2 + $0x3d0] sm:$0xff]
    %v536 = vld [vmem:[#allocation2 + $0x3d8] sm:$0xff]
    %v537 = vld [vmem:[#allocation2 + $0x3e0] sm:$0xff]
    %v538 = vld [vmem:[#allocation2 + $0x3e8] sm:$0xff]
    %v539 = vld [vmem:[#allocation2 + $0x3f0] sm:$0xff]
    %v540 = vld [vmem:[#allocation2 + $0x3f8] sm:$0xff]
    %v541 = vld [vmem:[#allocation2 + $0x400] sm:$0xff]
    %v542 = vld [vmem:[#allocation2 + $0x408] sm:$0xff]
    %v543 = vld [vmem:[#allocation2 + $0x410] sm:$0xff]
    %v544 = vld [vmem:[#allocation2 + $0x418] sm:$0xff]
    %v545 = vld [vmem:[#allocation2 + $0x420] sm:$0xff]
    %v546 = vld [vmem:[#allocation2 + $0x428] sm:$0xff]
    %v547 = vld [vmem:[#allocation2 + $0x430] sm:$0xff]
    %v548 = vld [vmem:[#allocation2 + $0x438] sm:$0xff]
    %v549 = vld [vmem:[#allocation2 + $0x440] sm:$0xff]
    %v550 = vld [vmem:[#allocation2 + $0x448] sm:$0xff]
    %v551 = vld [vmem:[#allocation2 + $0x450] sm:$0xff]
    %v552 = vld [vmem:[#allocation2 + $0x458] sm:$0xff]
    %v553 = vld [vmem:[#allocation2 + $0x460] sm:$0xff]
    %v554 = vld [vmem:[#allocation2 + $0x468] sm:$0xff]
    %v555 = vld [vmem:[#allocation2 + $0x470] sm:$0xff]
    %v556 = vld [vmem:[#allocation2 + $0x478] sm:$0xff]
    %v557 = vld [vmem:[#allocation2 + $0x480] sm:$0xff]
    %v558 = vld [vmem:[#allocation2 + $0x488] sm:$0xff]
    %v559 = vld [vmem:[#allocation2 + $0x490] sm:$0xff]
    %v560 = vld [vmem:[#allocation2 + $0x498] sm:$0xff]
    %v561 = vld [vmem:[#allocation2 + $0x4a0] sm:$0xff]
    %v562 = vld [vmem:[#allocation2 + $0x4a8] sm:$0xff]
    %v563 = vld [vmem:[#allocation2 + $0x4b0] sm:$0xff]
    %v564 = vld [vmem:[#allocation2 + $0x4b8] sm:$0xff]
    %v565 = vld [vmem:[#allocation2 + $0x4c0] sm:$0xff]
    %v566 = vld [vmem:[#allocation2 + $0x4c8] sm:$0xff]
    %v567 = vld [vmem:[#allocation2 + $0x4d0] sm:$0xff]
    %v568 = vld [vmem:[#allocation2 + $0x4d8] sm:$0xff]
    %v569 = vld [vmem:[#allocation2 + $0x4e0] sm:$0xff]
    %v570 = vld [vmem:[#allocation2 + $0x4e8] sm:$0xff]
    %v571 = vld [vmem:[#allocation2 + $0x4f0] sm:$0xff]
    %v572 = vld [vmem:[#allocation2 + $0x4f8] sm:$0xff]
    %v573 = vld [vmem:[#allocation2 + $0x500] sm:$0xff]
    %v574 = vld [vmem:[#allocation2 + $0x508] sm:$0xff]
    %v575 = vld [vmem:[#allocation2 + $0x510] sm:$0xff]
    %v576 = vld [vmem:[#allocation2 + $0x518] sm:$0xff]
    %v577 = vld [vmem:[#allocation2 + $0x520] sm:$0xff]
    %v578 = vld [vmem:[#allocation2 + $0x528] sm:$0xff]
    %v579 = vld [vmem:[#allocation2 + $0x530] sm:$0xff]
    %v580 = vld [vmem:[#allocation2 + $0x538] sm:$0xff]
    %v581 = vld [vmem:[#allocation2 + $0x540] sm:$0xff]
    %v582 = vld [vmem:[#allocation2 + $0x548] sm:$0xff]
    %v583 = vld [vmem:[#allocation2 + $0x550] sm:$0xff]
    %v584 = vld [vmem:[#allocation2 + $0x558] sm:$0xff]
    %v585 = vld [vmem:[#allocation2 + $0x560] sm:$0xff]
    %v586 = vld [vmem:[#allocation2 + $0x568] sm:$0xff]
    %v587 = vld [vmem:[#allocation2 + $0x570] sm:$0xff]
    %v588 = vld [vmem:[#allocation2 + $0x578] sm:$0xff]
    %v589 = vld [vmem:[#allocation2 + $0x580] sm:$0xff]
    %v590 = vld [vmem:[#allocation2 + $0x588] sm:$0xff]
    %v591 = vld [vmem:[#allocation2 + $0x590] sm:$0xff]
    %v592 = vld [vmem:[#allocation2 + $0x598] sm:$0xff]
    %v593 = vld [vmem:[#allocation2 + $0x5a0] sm:$0xff]
    %v594 = vld [vmem:[#allocation2 + $0x5a8] sm:$0xff]
    %v595 = vld [vmem:[#allocation2 + $0x5b0] sm:$0xff]
    %v596 = vld [vmem:[#allocation2 + $0x5b8] sm:$0xff]
    %v597 = vld [vmem:[#allocation2 + $0x5c0] sm:$0xff]
    %v598 = vld [vmem:[#allocation2 + $0x5c8] sm:$0xff]
    %v599 = vld [vmem:[#allocation2 + $0x5d0] sm:$0xff]
    %v600 = vld [vmem:[#allocation2 + $0x5d8] sm:$0xff]
    %v601 = vld [vmem:[#allocation2 + $0x5e0] sm:$0xff]
    %v602 = vld [vmem:[#allocation2 + $0x5e8] sm:$0xff]
    %v603 = vld [vmem:[#allocation2 + $0x5f0] sm:$0xff]
    %v604 = vld [vmem:[#allocation2 + $0x5f8] sm:$0xff]
    %v605 = vld [vmem:[#allocation2 + $0x600] sm:$0xff]
    %v606 = vld [vmem:[#allocation2 + $0x608] sm:$0xff]
    %v607 = vld [vmem:[#allocation2 + $0x610] sm:$0xff]
    %v608 = vld [vmem:[#allocation2 + $0x618] sm:$0xff]
    %v609 = vld [vmem:[#allocation2 + $0x620] sm:$0xff]
    %v610 = vld [vmem:[#allocation2 + $0x628] sm:$0xff]
    %v611 = vld [vmem:[#allocation2 + $0x630] sm:$0xff]
    %v612 = vld [vmem:[#allocation2 + $0x638] sm:$0xff]
    %v613 = vld [vmem:[#allocation2 + $0x640] sm:$0xff]
    %v614 = vld [vmem:[#allocation2 + $0x648] sm:$0xff]
    %v615 = vld [vmem:[#allocation2 + $0x650] sm:$0xff]
    %v616 = vld [vmem:[#allocation2 + $0x658] sm:$0xff]
    %v617 = vld [vmem:[#allocation2 + $0x660] sm:$0xff]
    %v618 = vld [vmem:[#allocation2 + $0x668] sm:$0xff]
    %v619 = vld [vmem:[#allocation2 + $0x670] sm:$0xff]
    %v620 = vld [vmem:[#allocation2 + $0x678] sm:$0xff]
    %v621 = vld [vmem:[#allocation2 + $0x680] sm:$0xff]
    %v622 = vld [vmem:[#allocation2 + $0x688] sm:$0xff]
    %v623 = vld [vmem:[#allocation2 + $0x690] sm:$0xff]
    %v624 = vld [vmem:[#allocation2 + $0x698] sm:$0xff]
    %v625 = vld [vmem:[#allocation2 + $0x6a0] sm:$0xff]
    %v626 = vld [vmem:[#allocation2 + $0x6a8] sm:$0xff]
    %v627 = vld [vmem:[#allocation2 + $0x6b0] sm:$0xff]
    %v628 = vld [vmem:[#allocation2 + $0x6b8] sm:$0xff]
    %v629 = vld [vmem:[#allocation2 + $0x6c0] sm:$0xff]
    %v630 = vld [vmem:[#allocation2 + $0x6c8] sm:$0xff]
    %v631 = vld [vmem:[#allocation2 + $0x6d0] sm:$0xff]
    %v632 = vld [vmem:[#allocation2 + $0x6d8] sm:$0xff]
    %v633 = vld [vmem:[#allocation2 + $0x6e0] sm:$0xff]
    %v634 = vld [vmem:[#allocation2 + $0x6e8] sm:$0xff]
    %v635 = vld [vmem:[#allocation2 + $0x6f0] sm:$0xff]
    %v636 = vld [vmem:[#allocation2 + $0x6f8] sm:$0xff]
    %v637 = vld [vmem:[#allocation2 + $0x700] sm:$0xff]
    %v638 = vld [vmem:[#allocation2 + $0x708] sm:$0xff]
    %v639 = vld [vmem:[#allocation2 + $0x710] sm:$0xff]
    %v640 = vld [vmem:[#allocation2 + $0x718] sm:$0xff]
    %v641 = vld [vmem:[#allocation2 + $0x720] sm:$0xff]
    %v642 = vld [vmem:[#allocation2 + $0x728] sm:$0xff]
    %v643 = vld [vmem:[#allocation2 + $0x730] sm:$0xff]
    %v644 = vld [vmem:[#allocation2 + $0x738] sm:$0xff]
    %v645 = vld [vmem:[#allocation2 + $0x740] sm:$0xff]
    %v646 = vld [vmem:[#allocation2 + $0x748] sm:$0xff]
    %v647 = vld [vmem:[#allocation2 + $0x750] sm:$0xff]
    %v648 = vld [vmem:[#allocation2 + $0x758] sm:$0xff]
    %v649 = vld [vmem:[#allocation2 + $0x760] sm:$0xff]
    %v650 = vld [vmem:[#allocation2 + $0x768] sm:$0xff]
    %v651 = vld [vmem:[#allocation2 + $0x770] sm:$0xff]
    %v652 = vld [vmem:[#allocation2 + $0x778] sm:$0xff]
    %v653 = vld [vmem:[#allocation2 + $0x780] sm:$0xff]
    %v654 = vld [vmem:[#allocation2 + $0x788] sm:$0xff]
    %v655 = vld [vmem:[#allocation2 + $0x790] sm:$0xff]
    %v656 = vld [vmem:[#allocation2 + $0x798] sm:$0xff]
    %v657 = vld [vmem:[#allocation2 + $0x7a0] sm:$0xff]
    %v658 = vld [vmem:[#allocation2 + $0x7a8] sm:$0xff]
    %v659 = vld [vmem:[#allocation2 + $0x7b0] sm:$0xff]
    %v660 = vld [vmem:[#allocation2 + $0x7b8] sm:$0xff]
    %v661 = vld [vmem:[#allocation2 + $0x7c0] sm:$0xff]
    %v662 = vld [vmem:[#allocation2 + $0x7c8] sm:$0xff]
    %v663 = vld [vmem:[#allocation2 + $0x7d0] sm:$0xff]
    %v664 = vld [vmem:[#allocation2 + $0x7d8] sm:$0xff]
    %v665 = vld [vmem:[#allocation2 + $0x7e0] sm:$0xff]
    %v666 = vld [vmem:[#allocation2 + $0x7e8] sm:$0xff]
    %v667 = vld [vmem:[#allocation2 + $0x7f0] sm:$0xff]
    %v668 = vld [vmem:[#allocation2 + $0x7f8] sm:$0xff]
    %v669 = vld [vmem:[%s4] sm:$0xff]
    %v671 = vlaneseq
    %v672 = vshrl.u32 %v671, 7
    %v673 = vsub.s32 0, %v672
    %v674 = vrot.slane %v669, %v673
    %v675 = vlaneseq
    %v676 = vshrl.u32 %v675, 7
    %v677 = vsub.s32 1, %v676
    %v678 = vrot.slane %v669, %v677
    %v679 = vlaneseq
    %v680 = vshrl.u32 %v679, 7
    %v681 = vsub.s32 2, %v680
    %v682 = vrot.slane %v669, %v681
    %v683 = vlaneseq
    %v684 = vshrl.u32 %v683, 7
    %v685 = vsub.s32 3, %v684
    %v686 = vrot.slane %v669, %v685
    %v687 = vlaneseq
    %v688 = vshrl.u32 %v687, 7
    %v689 = vsub.s32 4, %v688
    %v690 = vrot.slane %v669, %v689
    %v691 = vlaneseq
    %v692 = vshrl.u32 %v691, 7
    %v693 = vsub.s32 5, %v692
    %v694 = vrot.slane %v669, %v693
    %v695 = vlaneseq
    %v696 = vshrl.u32 %v695, 7
    %v697 = vsub.s32 6, %v696
    %v698 = vrot.slane %v669, %v697
    %v699 = vlaneseq
    %v700 = vshrl.u32 %v699, 7
    %v701 = vsub.s32 7, %v700
    %v702 = vrot.slane %v669, %v701
    %v967 = vunpack.c.l.b16 %v413
    %v968 = vunpack.c.h.b16 %v413
    %v969 = vunpack.c.l.b16 %v414
    %v970 = vunpack.c.h.b16 %v414
    %v971 = vunpack.c.l.b16 %v415
    %v972 = vunpack.c.h.b16 %v415
    %v973 = vunpack.c.l.b16 %v416
    %v974 = vunpack.c.h.b16 %v416
    %v975 = vunpack.c.l.b16 %v417
    %v976 = vunpack.c.h.b16 %v417
    %v977 = vunpack.c.l.b16 %v418
    %v978 = vunpack.c.h.b16 %v418
    %v979 = vunpack.c.l.b16 %v419
    %v980 = vunpack.c.h.b16 %v419
    %v981 = vunpack.c.l.b16 %v420
    %v982 = vunpack.c.h.b16 %v420
    %v983 = vunpack.c.l.b16 %v421
    %v984 = vunpack.c.h.b16 %v421
    %v985 = vunpack.c.l.b16 %v422
    %v986 = vunpack.c.h.b16 %v422
    %v987 = vunpack.c.l.b16 %v423
    %v988 = vunpack.c.h.b16 %v423
    %v989 = vunpack.c.l.b16 %v424
    %v990 = vunpack.c.h.b16 %v424
    %v991 = vunpack.c.l.b16 %v425
    %v992 = vunpack.c.h.b16 %v425
    %v993 = vunpack.c.l.b16 %v426
    %v994 = vunpack.c.h.b16 %v426
    %v995 = vunpack.c.l.b16 %v427
    %v996 = vunpack.c.h.b16 %v427
    %v997 = vunpack.c.l.b16 %v428
    %v998 = vunpack.c.h.b16 %v428
    %v999 = vunpack.c.l.b16 %v429
    %v1000 = vunpack.c.h.b16 %v429
    %v1001 = vunpack.c.l.b16 %v430
    %v1002 = vunpack.c.h.b16 %v430
    %v1003 = vunpack.c.l.b16 %v431
    %v1004 = vunpack.c.h.b16 %v431
    %v1005 = vunpack.c.l.b16 %v432
    %v1006 = vunpack.c.h.b16 %v432
    %v1007 = vunpack.c.l.b16 %v433
    %v1008 = vunpack.c.h.b16 %v433
    %v1009 = vunpack.c.l.b16 %v434
    %v1010 = vunpack.c.h.b16 %v434
    %v1011 = vunpack.c.l.b16 %v435
    %v1012 = vunpack.c.h.b16 %v435
    %v1013 = vunpack.c.l.b16 %v436
    %v1014 = vunpack.c.h.b16 %v436
    %v1015 = vunpack.c.l.b16 %v437
    %v1016 = vunpack.c.h.b16 %v437
    %v1017 = vunpack.c.l.b16 %v438
    %v1018 = vunpack.c.h.b16 %v438
    %v1019 = vunpack.c.l.b16 %v439
    %v1020 = vunpack.c.h.b16 %v439
    %v1021 = vunpack.c.l.b16 %v440
    %v1022 = vunpack.c.h.b16 %v440
    %v1023 = vunpack.c.l.b16 %v441
    %v1024 = vunpack.c.h.b16 %v441
    %v1025 = vunpack.c.l.b16 %v442
    %v1026 = vunpack.c.h.b16 %v442
    %v1027 = vunpack.c.l.b16 %v443
    %v1028 = vunpack.c.h.b16 %v443
    %v1029 = vunpack.c.l.b16 %v444
    %v1030 = vunpack.c.h.b16 %v444
    %v1031 = vunpack.c.l.b16 %v445
    %v1032 = vunpack.c.h.b16 %v445
    %v1033 = vunpack.c.l.b16 %v446
    %v1034 = vunpack.c.h.b16 %v446
    %v1035 = vunpack.c.l.b16 %v447
    %v1036 = vunpack.c.h.b16 %v447
    %v1037 = vunpack.c.l.b16 %v448
    %v1038 = vunpack.c.h.b16 %v448
    %v1039 = vunpack.c.l.b16 %v449
    %v1040 = vunpack.c.h.b16 %v449
    %v1041 = vunpack.c.l.b16 %v450
    %v1042 = vunpack.c.h.b16 %v450
    %v1043 = vunpack.c.l.b16 %v451
    %v1044 = vunpack.c.h.b16 %v451
    %v1045 = vunpack.c.l.b16 %v452
    %v1046 = vunpack.c.h.b16 %v452
    %v1047 = vunpack.c.l.b16 %v453
    %v1048 = vunpack.c.h.b16 %v453
    %v1049 = vunpack.c.l.b16 %v454
    %v1050 = vunpack.c.h.b16 %v454
    %v1051 = vunpack.c.l.b16 %v455
    %v1052 = vunpack.c.h.b16 %v455
    %v1053 = vunpack.c.l.b16 %v456
    %v1054 = vunpack.c.h.b16 %v456
    %v1055 = vunpack.c.l.b16 %v457
    %v1056 = vunpack.c.h.b16 %v457
    %v1057 = vunpack.c.l.b16 %v458
    %v1058 = vunpack.c.h.b16 %v458
    %v1059 = vunpack.c.l.b16 %v459
    %v1060 = vunpack.c.h.b16 %v459
    %v1061 = vunpack.c.l.b16 %v460
    %v1062 = vunpack.c.h.b16 %v460
    %v1063 = vunpack.c.l.b16 %v461
    %v1064 = vunpack.c.h.b16 %v461
    %v1065 = vunpack.c.l.b16 %v462
    %v1066 = vunpack.c.h.b16 %v462
    %v1067 = vunpack.c.l.b16 %v463
    %v1068 = vunpack.c.h.b16 %v463
    %v1069 = vunpack.c.l.b16 %v464
    %v1070 = vunpack.c.h.b16 %v464
    %v1071 = vunpack.c.l.b16 %v465
    %v1072 = vunpack.c.h.b16 %v465
    %v1073 = vunpack.c.l.b16 %v466
    %v1074 = vunpack.c.h.b16 %v466
    %v1075 = vunpack.c.l.b16 %v467
    %v1076 = vunpack.c.h.b16 %v467
    %v1077 = vunpack.c.l.b16 %v468
    %v1078 = vunpack.c.h.b16 %v468
    %v1079 = vunpack.c.l.b16 %v469
    %v1080 = vunpack.c.h.b16 %v469
    %v1081 = vunpack.c.l.b16 %v470
    %v1082 = vunpack.c.h.b16 %v470
    %v1083 = vunpack.c.l.b16 %v471
    %v1084 = vunpack.c.h.b16 %v471
    %v1085 = vunpack.c.l.b16 %v472
    %v1086 = vunpack.c.h.b16 %v472
    %v1087 = vunpack.c.l.b16 %v473
    %v1088 = vunpack.c.h.b16 %v473
    %v1089 = vunpack.c.l.b16 %v474
    %v1090 = vunpack.c.h.b16 %v474
    %v1091 = vunpack.c.l.b16 %v475
    %v1092 = vunpack.c.h.b16 %v475
    %v1093 = vunpack.c.l.b16 %v476
    %v1094 = vunpack.c.h.b16 %v476
    %v1095 = vunpack.c.l.b16 %v477
    %v1096 = vunpack.c.h.b16 %v477
    %v1097 = vunpack.c.l.b16 %v478
    %v1098 = vunpack.c.h.b16 %v478
    %v1099 = vunpack.c.l.b16 %v479
    %v1100 = vunpack.c.h.b16 %v479
    %v1101 = vunpack.c.l.b16 %v480
    %v1102 = vunpack.c.h.b16 %v480
    %v1103 = vunpack.c.l.b16 %v481
    %v1104 = vunpack.c.h.b16 %v481
    %v1105 = vunpack.c.l.b16 %v482
    %v1106 = vunpack.c.h.b16 %v482
    %v1107 = vunpack.c.l.b16 %v483
    %v1108 = vunpack.c.h.b16 %v483
    %v1109 = vunpack.c.l.b16 %v484
    %v1110 = vunpack.c.h.b16 %v484
    %v1111 = vunpack.c.l.b16 %v485
    %v1112 = vunpack.c.h.b16 %v485
    %v1113 = vunpack.c.l.b16 %v486
    %v1114 = vunpack.c.h.b16 %v486
    %v1115 = vunpack.c.l.b16 %v487
    %v1116 = vunpack.c.h.b16 %v487
    %v1117 = vunpack.c.l.b16 %v488
    %v1118 = vunpack.c.h.b16 %v488
    %v1119 = vunpack.c.l.b16 %v489
    %v1120 = vunpack.c.h.b16 %v489
    %v1121 = vunpack.c.l.b16 %v490
    %v1122 = vunpack.c.h.b16 %v490
    %v1123 = vunpack.c.l.b16 %v491
    %v1124 = vunpack.c.h.b16 %v491
    %v1125 = vunpack.c.l.b16 %v492
    %v1126 = vunpack.c.h.b16 %v492
    %v1127 = vunpack.c.l.b16 %v493
    %v1128 = vunpack.c.h.b16 %v493
    %v1129 = vunpack.c.l.b16 %v494
    %v1130 = vunpack.c.h.b16 %v494
    %v1131 = vunpack.c.l.b16 %v495
    %v1132 = vunpack.c.h.b16 %v495
    %v1133 = vunpack.c.l.b16 %v496
    %v1134 = vunpack.c.h.b16 %v496
    %v1135 = vunpack.c.l.b16 %v497
    %v1136 = vunpack.c.h.b16 %v497
    %v1137 = vunpack.c.l.b16 %v498
    %v1138 = vunpack.c.h.b16 %v498
    %v1139 = vunpack.c.l.b16 %v499
    %v1140 = vunpack.c.h.b16 %v499
    %v1141 = vunpack.c.l.b16 %v500
    %v1142 = vunpack.c.h.b16 %v500
    %v1143 = vunpack.c.l.b16 %v501
    %v1144 = vunpack.c.h.b16 %v501
    %v1145 = vunpack.c.l.b16 %v502
    %v1146 = vunpack.c.h.b16 %v502
    %v1147 = vunpack.c.l.b16 %v503
    %v1148 = vunpack.c.h.b16 %v503
    %v1149 = vunpack.c.l.b16 %v504
    %v1150 = vunpack.c.h.b16 %v504
    %v1151 = vunpack.c.l.b16 %v505
    %v1152 = vunpack.c.h.b16 %v505
    %v1153 = vunpack.c.l.b16 %v506
    %v1154 = vunpack.c.h.b16 %v506
    %v1155 = vunpack.c.l.b16 %v507
    %v1156 = vunpack.c.h.b16 %v507
    %v1157 = vunpack.c.l.b16 %v508
    %v1158 = vunpack.c.h.b16 %v508
    %v1159 = vunpack.c.l.b16 %v509
    %v1160 = vunpack.c.h.b16 %v509
    %v1161 = vunpack.c.l.b16 %v510
    %v1162 = vunpack.c.h.b16 %v510
    %v1163 = vunpack.c.l.b16 %v511
    %v1164 = vunpack.c.h.b16 %v511
    %v1165 = vunpack.c.l.b16 %v512
    %v1166 = vunpack.c.h.b16 %v512
    %v1167 = vunpack.c.l.b16 %v513
    %v1168 = vunpack.c.h.b16 %v513
    %v1169 = vunpack.c.l.b16 %v514
    %v1170 = vunpack.c.h.b16 %v514
    %v1171 = vunpack.c.l.b16 %v515
    %v1172 = vunpack.c.h.b16 %v515
    %v1173 = vunpack.c.l.b16 %v516
    %v1174 = vunpack.c.h.b16 %v516
    %v1175 = vunpack.c.l.b16 %v517
    %v1176 = vunpack.c.h.b16 %v517
    %v1177 = vunpack.c.l.b16 %v518
    %v1178 = vunpack.c.h.b16 %v518
    %v1179 = vunpack.c.l.b16 %v519
    %v1180 = vunpack.c.h.b16 %v519
    %v1181 = vunpack.c.l.b16 %v520
    %v1182 = vunpack.c.h.b16 %v520
    %v1183 = vunpack.c.l.b16 %v521
    %v1184 = vunpack.c.h.b16 %v521
    %v1185 = vunpack.c.l.b16 %v522
    %v1186 = vunpack.c.h.b16 %v522
    %v1187 = vunpack.c.l.b16 %v523
    %v1188 = vunpack.c.h.b16 %v523
    %v1189 = vunpack.c.l.b16 %v524
    %v1190 = vunpack.c.h.b16 %v524
    %v1191 = vunpack.c.l.b16 %v525
    %v1192 = vunpack.c.h.b16 %v525
    %v1193 = vunpack.c.l.b16 %v526
    %v1194 = vunpack.c.h.b16 %v526
    %v1195 = vunpack.c.l.b16 %v527
    %v1196 = vunpack.c.h.b16 %v527
    %v1197 = vunpack.c.l.b16 %v528
    %v1198 = vunpack.c.h.b16 %v528
    %v1199 = vunpack.c.l.b16 %v529
    %v1200 = vunpack.c.h.b16 %v529
    %v1201 = vunpack.c.l.b16 %v530
    %v1202 = vunpack.c.h.b16 %v530
    %v1203 = vunpack.c.l.b16 %v531
    %v1204 = vunpack.c.h.b16 %v531
    %v1205 = vunpack.c.l.b16 %v532
    %v1206 = vunpack.c.h.b16 %v532
    %v1207 = vunpack.c.l.b16 %v533
    %v1208 = vunpack.c.h.b16 %v533
    %v1209 = vunpack.c.l.b16 %v534
    %v1210 = vunpack.c.h.b16 %v534
    %v1211 = vunpack.c.l.b16 %v535
    %v1212 = vunpack.c.h.b16 %v535
    %v1213 = vunpack.c.l.b16 %v536
    %v1214 = vunpack.c.h.b16 %v536
    %v1215 = vunpack.c.l.b16 %v537
    %v1216 = vunpack.c.h.b16 %v537
    %v1217 = vunpack.c.l.b16 %v538
    %v1218 = vunpack.c.h.b16 %v538
    %v1219 = vunpack.c.l.b16 %v539
    %v1220 = vunpack.c.h.b16 %v539
    %v1221 = vunpack.c.l.b16 %v540
    %v1222 = vunpack.c.h.b16 %v540
    %v1223 = vunpack.c.l.b16 %v541
    %v1224 = vunpack.c.h.b16 %v541
    %v1225 = vunpack.c.l.b16 %v542
    %v1226 = vunpack.c.h.b16 %v542
    %v1227 = vunpack.c.l.b16 %v543
    %v1228 = vunpack.c.h.b16 %v543
    %v1229 = vunpack.c.l.b16 %v544
    %v1230 = vunpack.c.h.b16 %v544
    %v1231 = vunpack.c.l.b16 %v545
    %v1232 = vunpack.c.h.b16 %v545
    %v1233 = vunpack.c.l.b16 %v546
    %v1234 = vunpack.c.h.b16 %v546
    %v1235 = vunpack.c.l.b16 %v547
    %v1236 = vunpack.c.h.b16 %v547
    %v1237 = vunpack.c.l.b16 %v548
    %v1238 = vunpack.c.h.b16 %v548
    %v1239 = vunpack.c.l.b16 %v549
    %v1240 = vunpack.c.h.b16 %v549
    %v1241 = vunpack.c.l.b16 %v550
    %v1242 = vunpack.c.h.b16 %v550
    %v1243 = vunpack.c.l.b16 %v551
    %v1244 = vunpack.c.h.b16 %v551
    %v1245 = vunpack.c.l.b16 %v552
    %v1246 = vunpack.c.h.b16 %v552
    %v1247 = vunpack.c.l.b16 %v553
    %v1248 = vunpack.c.h.b16 %v553
    %v1249 = vunpack.c.l.b16 %v554
    %v1250 = vunpack.c.h.b16 %v554
    %v1251 = vunpack.c.l.b16 %v555
    %v1252 = vunpack.c.h.b16 %v555
    %v1253 = vunpack.c.l.b16 %v556
    %v1254 = vunpack.c.h.b16 %v556
    %v1255 = vunpack.c.l.b16 %v557
    %v1256 = vunpack.c.h.b16 %v557
    %v1257 = vunpack.c.l.b16 %v558
    %v1258 = vunpack.c.h.b16 %v558
    %v1259 = vunpack.c.l.b16 %v559
    %v1260 = vunpack.c.h.b16 %v559
    %v1261 = vunpack.c.l.b16 %v560
    %v1262 = vunpack.c.h.b16 %v560
    %v1263 = vunpack.c.l.b16 %v561
    %v1264 = vunpack.c.h.b16 %v561
    %v1265 = vunpack.c.l.b16 %v562
    %v1266 = vunpack.c.h.b16 %v562
    %v1267 = vunpack.c.l.b16 %v563
    %v1268 = vunpack.c.h.b16 %v563
    %v1269 = vunpack.c.l.b16 %v564
    %v1270 = vunpack.c.h.b16 %v564
    %v1271 = vunpack.c.l.b16 %v565
    %v1272 = vunpack.c.h.b16 %v565
    %v1273 = vunpack.c.l.b16 %v566
    %v1274 = vunpack.c.h.b16 %v566
    %v1275 = vunpack.c.l.b16 %v567
    %v1276 = vunpack.c.h.b16 %v567
    %v1277 = vunpack.c.l.b16 %v568
    %v1278 = vunpack.c.h.b16 %v568
    %v1279 = vunpack.c.l.b16 %v569
    %v1280 = vunpack.c.h.b16 %v569
    %v1281 = vunpack.c.l.b16 %v570
    %v1282 = vunpack.c.h.b16 %v570
    %v1283 = vunpack.c.l.b16 %v571
    %v1284 = vunpack.c.h.b16 %v571
    %v1285 = vunpack.c.l.b16 %v572
    %v1286 = vunpack.c.h.b16 %v572
    %v1287 = vunpack.c.l.b16 %v573
    %v1288 = vunpack.c.h.b16 %v573
    %v1289 = vunpack.c.l.b16 %v574
    %v1290 = vunpack.c.h.b16 %v574
    %v1291 = vunpack.c.l.b16 %v575
    %v1292 = vunpack.c.h.b16 %v575
    %v1293 = vunpack.c.l.b16 %v576
    %v1294 = vunpack.c.h.b16 %v576
    %v1295 = vunpack.c.l.b16 %v577
    %v1296 = vunpack.c.h.b16 %v577
    %v1297 = vunpack.c.l.b16 %v578
    %v1298 = vunpack.c.h.b16 %v578
    %v1299 = vunpack.c.l.b16 %v579
    %v1300 = vunpack.c.h.b16 %v579
    %v1301 = vunpack.c.l.b16 %v580
    %v1302 = vunpack.c.h.b16 %v580
    %v1303 = vunpack.c.l.b16 %v581
    %v1304 = vunpack.c.h.b16 %v581
    %v1305 = vunpack.c.l.b16 %v582
    %v1306 = vunpack.c.h.b16 %v582
    %v1307 = vunpack.c.l.b16 %v583
    %v1308 = vunpack.c.h.b16 %v583
    %v1309 = vunpack.c.l.b16 %v584
    %v1310 = vunpack.c.h.b16 %v584
    %v1311 = vunpack.c.l.b16 %v585
    %v1312 = vunpack.c.h.b16 %v585
    %v1313 = vunpack.c.l.b16 %v586
    %v1314 = vunpack.c.h.b16 %v586
    %v1315 = vunpack.c.l.b16 %v587
    %v1316 = vunpack.c.h.b16 %v587
    %v1317 = vunpack.c.l.b16 %v588
    %v1318 = vunpack.c.h.b16 %v588
    %v1319 = vunpack.c.l.b16 %v589
    %v1320 = vunpack.c.h.b16 %v589
    %v1321 = vunpack.c.l.b16 %v590
    %v1322 = vunpack.c.h.b16 %v590
    %v1323 = vunpack.c.l.b16 %v591
    %v1324 = vunpack.c.h.b16 %v591
    %v1325 = vunpack.c.l.b16 %v592
    %v1326 = vunpack.c.h.b16 %v592
    %v1327 = vunpack.c.l.b16 %v593
    %v1328 = vunpack.c.h.b16 %v593
    %v1329 = vunpack.c.l.b16 %v594
    %v1330 = vunpack.c.h.b16 %v594
    %v1331 = vunpack.c.l.b16 %v595
    %v1332 = vunpack.c.h.b16 %v595
    %v1333 = vunpack.c.l.b16 %v596
    %v1334 = vunpack.c.h.b16 %v596
    %v1335 = vunpack.c.l.b16 %v597
    %v1336 = vunpack.c.h.b16 %v597
    %v1337 = vunpack.c.l.b16 %v598
    %v1338 = vunpack.c.h.b16 %v598
    %v1339 = vunpack.c.l.b16 %v599
    %v1340 = vunpack.c.h.b16 %v599
    %v1341 = vunpack.c.l.b16 %v600
    %v1342 = vunpack.c.h.b16 %v600
    %v1343 = vunpack.c.l.b16 %v601
    %v1344 = vunpack.c.h.b16 %v601
    %v1345 = vunpack.c.l.b16 %v602
    %v1346 = vunpack.c.h.b16 %v602
    %v1347 = vunpack.c.l.b16 %v603
    %v1348 = vunpack.c.h.b16 %v603
    %v1349 = vunpack.c.l.b16 %v604
    %v1350 = vunpack.c.h.b16 %v604
    %v1351 = vunpack.c.l.b16 %v605
    %v1352 = vunpack.c.h.b16 %v605
    %v1353 = vunpack.c.l.b16 %v606
    %v1354 = vunpack.c.h.b16 %v606
    %v1355 = vunpack.c.l.b16 %v607
    %v1356 = vunpack.c.h.b16 %v607
    %v1357 = vunpack.c.l.b16 %v608
    %v1358 = vunpack.c.h.b16 %v608
    %v1359 = vunpack.c.l.b16 %v609
    %v1360 = vunpack.c.h.b16 %v609
    %v1361 = vunpack.c.l.b16 %v610
    %v1362 = vunpack.c.h.b16 %v610
    %v1363 = vunpack.c.l.b16 %v611
    %v1364 = vunpack.c.h.b16 %v611
    %v1365 = vunpack.c.l.b16 %v612
    %v1366 = vunpack.c.h.b16 %v612
    %v1367 = vunpack.c.l.b16 %v613
    %v1368 = vunpack.c.h.b16 %v613
    %v1369 = vunpack.c.l.b16 %v614
    %v1370 = vunpack.c.h.b16 %v614
    %v1371 = vunpack.c.l.b16 %v615
    %v1372 = vunpack.c.h.b16 %v615
    %v1373 = vunpack.c.l.b16 %v616
    %v1374 = vunpack.c.h.b16 %v616
    %v1375 = vunpack.c.l.b16 %v617
    %v1376 = vunpack.c.h.b16 %v617
    %v1377 = vunpack.c.l.b16 %v618
    %v1378 = vunpack.c.h.b16 %v618
    %v1379 = vunpack.c.l.b16 %v619
    %v1380 = vunpack.c.h.b16 %v619
    %v1381 = vunpack.c.l.b16 %v620
    %v1382 = vunpack.c.h.b16 %v620
    %v1383 = vunpack.c.l.b16 %v621
    %v1384 = vunpack.c.h.b16 %v621
    %v1385 = vunpack.c.l.b16 %v622
    %v1386 = vunpack.c.h.b16 %v622
    %v1387 = vunpack.c.l.b16 %v623
    %v1388 = vunpack.c.h.b16 %v623
    %v1389 = vunpack.c.l.b16 %v624
    %v1390 = vunpack.c.h.b16 %v624
    %v1391 = vunpack.c.l.b16 %v625
    %v1392 = vunpack.c.h.b16 %v625
    %v1393 = vunpack.c.l.b16 %v626
    %v1394 = vunpack.c.h.b16 %v626
    %v1395 = vunpack.c.l.b16 %v627
    %v1396 = vunpack.c.h.b16 %v627
    %v1397 = vunpack.c.l.b16 %v628
    %v1398 = vunpack.c.h.b16 %v628
    %v1399 = vunpack.c.l.b16 %v629
    %v1400 = vunpack.c.h.b16 %v629
    %v1401 = vunpack.c.l.b16 %v630
    %v1402 = vunpack.c.h.b16 %v630
    %v1403 = vunpack.c.l.b16 %v631
    %v1404 = vunpack.c.h.b16 %v631
    %v1405 = vunpack.c.l.b16 %v632
    %v1406 = vunpack.c.h.b16 %v632
    %v1407 = vunpack.c.l.b16 %v633
    %v1408 = vunpack.c.h.b16 %v633
    %v1409 = vunpack.c.l.b16 %v634
    %v1410 = vunpack.c.h.b16 %v634
    %v1411 = vunpack.c.l.b16 %v635
    %v1412 = vunpack.c.h.b16 %v635
    %v1413 = vunpack.c.l.b16 %v636
    %v1414 = vunpack.c.h.b16 %v636
    %v1415 = vunpack.c.l.b16 %v637
    %v1416 = vunpack.c.h.b16 %v637
    %v1417 = vunpack.c.l.b16 %v638
    %v1418 = vunpack.c.h.b16 %v638
    %v1419 = vunpack.c.l.b16 %v639
    %v1420 = vunpack.c.h.b16 %v639
    %v1421 = vunpack.c.l.b16 %v640
    %v1422 = vunpack.c.h.b16 %v640
    %v1423 = vunpack.c.l.b16 %v641
    %v1424 = vunpack.c.h.b16 %v641
    %v1425 = vunpack.c.l.b16 %v642
    %v1426 = vunpack.c.h.b16 %v642
    %v1427 = vunpack.c.l.b16 %v643
    %v1428 = vunpack.c.h.b16 %v643
    %v1429 = vunpack.c.l.b16 %v644
    %v1430 = vunpack.c.h.b16 %v644
    %v1431 = vunpack.c.l.b16 %v645
    %v1432 = vunpack.c.h.b16 %v645
    %v1433 = vunpack.c.l.b16 %v646
    %v1434 = vunpack.c.h.b16 %v646
    %v1435 = vunpack.c.l.b16 %v647
    %v1436 = vunpack.c.h.b16 %v647
    %v1437 = vunpack.c.l.b16 %v648
    %v1438 = vunpack.c.h.b16 %v648
    %v1439 = vunpack.c.l.b16 %v649
    %v1440 = vunpack.c.h.b16 %v649
    %v1441 = vunpack.c.l.b16 %v650
    %v1442 = vunpack.c.h.b16 %v650
    %v1443 = vunpack.c.l.b16 %v651
    %v1444 = vunpack.c.h.b16 %v651
    %v1445 = vunpack.c.l.b16 %v652
    %v1446 = vunpack.c.h.b16 %v652
    %v1447 = vunpack.c.l.b16 %v653
    %v1448 = vunpack.c.h.b16 %v653
    %v1449 = vunpack.c.l.b16 %v654
    %v1450 = vunpack.c.h.b16 %v654
    %v1451 = vunpack.c.l.b16 %v655
    %v1452 = vunpack.c.h.b16 %v655
    %v1453 = vunpack.c.l.b16 %v656
    %v1454 = vunpack.c.h.b16 %v656
    %v1455 = vunpack.c.l.b16 %v657
    %v1456 = vunpack.c.h.b16 %v657
    %v1457 = vunpack.c.l.b16 %v658
    %v1458 = vunpack.c.h.b16 %v658
    %v1459 = vunpack.c.l.b16 %v659
    %v1460 = vunpack.c.h.b16 %v659
    %v1461 = vunpack.c.l.b16 %v660
    %v1462 = vunpack.c.h.b16 %v660
    %v1463 = vunpack.c.l.b16 %v661
    %v1464 = vunpack.c.h.b16 %v661
    %v1465 = vunpack.c.l.b16 %v662
    %v1466 = vunpack.c.h.b16 %v662
    %v1467 = vunpack.c.l.b16 %v663
    %v1468 = vunpack.c.h.b16 %v663
    %v1469 = vunpack.c.l.b16 %v664
    %v1470 = vunpack.c.h.b16 %v664
    %v1471 = vunpack.c.l.b16 %v665
    %v1472 = vunpack.c.h.b16 %v665
    %v1473 = vunpack.c.l.b16 %v666
    %v1474 = vunpack.c.h.b16 %v666
    %v1475 = vunpack.c.l.b16 %v667
    %v1476 = vunpack.c.h.b16 %v667
    %v1477 = vunpack.c.l.b16 %v668
    %v1478 = vunpack.c.h.b16 %v668
    %v1479 = vpack.c.b16 %v975, %v967
    %v1480 = vpack.c.b16 %v976, %v968
    %v1481 = vpack.c.b16 %v977, %v969
    %v1482 = vpack.c.b16 %v978, %v970
    %v1483 = vpack.c.b16 %v979, %v971
    %v1484 = vpack.c.b16 %v980, %v972
    %v1485 = vpack.c.b16 %v981, %v973
    %v1486 = vpack.c.b16 %v982, %v974
    %v1487 = vpack.c.b16 %v991, %v983
    %v1488 = vpack.c.b16 %v992, %v984
    %v1489 = vpack.c.b16 %v993, %v985
    %v1490 = vpack.c.b16 %v994, %v986
    %v1491 = vpack.c.b16 %v995, %v987
    %v1492 = vpack.c.b16 %v996, %v988
    %v1493 = vpack.c.b16 %v997, %v989
    %v1494 = vpack.c.b16 %v998, %v990
    %v1495 = vpack.c.b16 %v1007, %v999
    %v1496 = vpack.c.b16 %v1008, %v1000
    %v1497 = vpack.c.b16 %v1009, %v1001
    %v1498 = vpack.c.b16 %v1010, %v1002
    %v1499 = vpack.c.b16 %v1011, %v1003
    %v1500 = vpack.c.b16 %v1012, %v1004
    %v1501 = vpack.c.b16 %v1013, %v1005
    %v1502 = vpack.c.b16 %v1014, %v1006
    %v1503 = vpack.c.b16 %v1023, %v1015
    %v1504 = vpack.c.b16 %v1024, %v1016
    %v1505 = vpack.c.b16 %v1025, %v1017
    %v1506 = vpack.c.b16 %v1026, %v1018
    %v1507 = vpack.c.b16 %v1027, %v1019
    %v1508 = vpack.c.b16 %v1028, %v1020
    %v1509 = vpack.c.b16 %v1029, %v1021
    %v1510 = vpack.c.b16 %v1030, %v1022
    %v1511 = vpack.c.b16 %v1039, %v1031
    %v1512 = vpack.c.b16 %v1040, %v1032
    %v1513 = vpack.c.b16 %v1041, %v1033
    %v1514 = vpack.c.b16 %v1042, %v1034
    %v1515 = vpack.c.b16 %v1043, %v1035
    %v1516 = vpack.c.b16 %v1044, %v1036
    %v1517 = vpack.c.b16 %v1045, %v1037
    %v1518 = vpack.c.b16 %v1046, %v1038
    %v1519 = vpack.c.b16 %v1055, %v1047
    %v1520 = vpack.c.b16 %v1056, %v1048
    %v1521 = vpack.c.b16 %v1057, %v1049
    %v1522 = vpack.c.b16 %v1058, %v1050
    %v1523 = vpack.c.b16 %v1059, %v1051
    %v1524 = vpack.c.b16 %v1060, %v1052
    %v1525 = vpack.c.b16 %v1061, %v1053
    %v1526 = vpack.c.b16 %v1062, %v1054
    %v1527 = vpack.c.b16 %v1071, %v1063
    %v1528 = vpack.c.b16 %v1072, %v1064
    %v1529 = vpack.c.b16 %v1073, %v1065
    %v1530 = vpack.c.b16 %v1074, %v1066
    %v1531 = vpack.c.b16 %v1075, %v1067
    %v1532 = vpack.c.b16 %v1076, %v1068
    %v1533 = vpack.c.b16 %v1077, %v1069
    %v1534 = vpack.c.b16 %v1078, %v1070
    %v1535 = vpack.c.b16 %v1087, %v1079
    %v1536 = vpack.c.b16 %v1088, %v1080
    %v1537 = vpack.c.b16 %v1089, %v1081
    %v1538 = vpack.c.b16 %v1090, %v1082
    %v1539 = vpack.c.b16 %v1091, %v1083
    %v1540 = vpack.c.b16 %v1092, %v1084
    %v1541 = vpack.c.b16 %v1093, %v1085
    %v1542 = vpack.c.b16 %v1094, %v1086
    %v1543 = vpack.c.b16 %v1103, %v1095
    %v1544 = vpack.c.b16 %v1104, %v1096
    %v1545 = vpack.c.b16 %v1105, %v1097
    %v1546 = vpack.c.b16 %v1106, %v1098
    %v1547 = vpack.c.b16 %v1107, %v1099
    %v1548 = vpack.c.b16 %v1108, %v1100
    %v1549 = vpack.c.b16 %v1109, %v1101
    %v1550 = vpack.c.b16 %v1110, %v1102
    %v1551 = vpack.c.b16 %v1119, %v1111
    %v1552 = vpack.c.b16 %v1120, %v1112
    %v1553 = vpack.c.b16 %v1121, %v1113
    %v1554 = vpack.c.b16 %v1122, %v1114
    %v1555 = vpack.c.b16 %v1123, %v1115
    %v1556 = vpack.c.b16 %v1124, %v1116
    %v1557 = vpack.c.b16 %v1125, %v1117
    %v1558 = vpack.c.b16 %v1126, %v1118
    %v1559 = vpack.c.b16 %v1135, %v1127
    %v1560 = vpack.c.b16 %v1136, %v1128
    %v1561 = vpack.c.b16 %v1137, %v1129
    %v1562 = vpack.c.b16 %v1138, %v1130
    %v1563 = vpack.c.b16 %v1139, %v1131
    %v1564 = vpack.c.b16 %v1140, %v1132
    %v1565 = vpack.c.b16 %v1141, %v1133
    %v1566 = vpack.c.b16 %v1142, %v1134
    %v1567 = vpack.c.b16 %v1151, %v1143
    %v1568 = vpack.c.b16 %v1152, %v1144
    %v1569 = vpack.c.b16 %v1153, %v1145
    %v1570 = vpack.c.b16 %v1154, %v1146
    %v1571 = vpack.c.b16 %v1155, %v1147
    %v1572 = vpack.c.b16 %v1156, %v1148
    %v1573 = vpack.c.b16 %v1157, %v1149
    %v1574 = vpack.c.b16 %v1158, %v1150
    %v1575 = vpack.c.b16 %v1167, %v1159
    %v1576 = vpack.c.b16 %v1168, %v1160
    %v1577 = vpack.c.b16 %v1169, %v1161
    %v1578 = vpack.c.b16 %v1170, %v1162
    %v1579 = vpack.c.b16 %v1171, %v1163
    %v1580 = vpack.c.b16 %v1172, %v1164
    %v1581 = vpack.c.b16 %v1173, %v1165
    %v1582 = vpack.c.b16 %v1174, %v1166
    %v1583 = vpack.c.b16 %v1183, %v1175
    %v1584 = vpack.c.b16 %v1184, %v1176
    %v1585 = vpack.c.b16 %v1185, %v1177
    %v1586 = vpack.c.b16 %v1186, %v1178
    %v1587 = vpack.c.b16 %v1187, %v1179
    %v1588 = vpack.c.b16 %v1188, %v1180
    %v1589 = vpack.c.b16 %v1189, %v1181
    %v1590 = vpack.c.b16 %v1190, %v1182
    %v1591 = vpack.c.b16 %v1199, %v1191
    %v1592 = vpack.c.b16 %v1200, %v1192
    %v1593 = vpack.c.b16 %v1201, %v1193
    %v1594 = vpack.c.b16 %v1202, %v1194
    %v1595 = vpack.c.b16 %v1203, %v1195
    %v1596 = vpack.c.b16 %v1204, %v1196
    %v1597 = vpack.c.b16 %v1205, %v1197
    %v1598 = vpack.c.b16 %v1206, %v1198
    %v1599 = vpack.c.b16 %v1215, %v1207
    %v1600 = vpack.c.b16 %v1216, %v1208
    %v1601 = vpack.c.b16 %v1217, %v1209
    %v1602 = vpack.c.b16 %v1218, %v1210
    %v1603 = vpack.c.b16 %v1219, %v1211
    %v1604 = vpack.c.b16 %v1220, %v1212
    %v1605 = vpack.c.b16 %v1221, %v1213
    %v1606 = vpack.c.b16 %v1222, %v1214
    %v1607 = vpack.c.b16 %v1231, %v1223
    %v1608 = vpack.c.b16 %v1232, %v1224
    %v1609 = vpack.c.b16 %v1233, %v1225
    %v1610 = vpack.c.b16 %v1234, %v1226
    %v1611 = vpack.c.b16 %v1235, %v1227
    %v1612 = vpack.c.b16 %v1236, %v1228
    %v1613 = vpack.c.b16 %v1237, %v1229
    %v1614 = vpack.c.b16 %v1238, %v1230
    %v1615 = vpack.c.b16 %v1247, %v1239
    %v1616 = vpack.c.b16 %v1248, %v1240
    %v1617 = vpack.c.b16 %v1249, %v1241
    %v1618 = vpack.c.b16 %v1250, %v1242
    %v1619 = vpack.c.b16 %v1251, %v1243
    %v1620 = vpack.c.b16 %v1252, %v1244
    %v1621 = vpack.c.b16 %v1253, %v1245
    %v1622 = vpack.c.b16 %v1254, %v1246
    %v1623 = vpack.c.b16 %v1263, %v1255
    %v1624 = vpack.c.b16 %v1264, %v1256
    %v1625 = vpack.c.b16 %v1265, %v1257
    %v1626 = vpack.c.b16 %v1266, %v1258
    %v1627 = vpack.c.b16 %v1267, %v1259
    %v1628 = vpack.c.b16 %v1268, %v1260
    %v1629 = vpack.c.b16 %v1269, %v1261
    %v1630 = vpack.c.b16 %v1270, %v1262
    %v1631 = vpack.c.b16 %v1279, %v1271
    %v1632 = vpack.c.b16 %v1280, %v1272
    %v1633 = vpack.c.b16 %v1281, %v1273
    %v1634 = vpack.c.b16 %v1282, %v1274
    %v1635 = vpack.c.b16 %v1283, %v1275
    %v1636 = vpack.c.b16 %v1284, %v1276
    %v1637 = vpack.c.b16 %v1285, %v1277
    %v1638 = vpack.c.b16 %v1286, %v1278
    %v1639 = vpack.c.b16 %v1295, %v1287
    %v1640 = vpack.c.b16 %v1296, %v1288
    %v1641 = vpack.c.b16 %v1297, %v1289
    %v1642 = vpack.c.b16 %v1298, %v1290
    %v1643 = vpack.c.b16 %v1299, %v1291
    %v1644 = vpack.c.b16 %v1300, %v1292
    %v1645 = vpack.c.b16 %v1301, %v1293
    %v1646 = vpack.c.b16 %v1302, %v1294
    %v1647 = vpack.c.b16 %v1311, %v1303
    %v1648 = vpack.c.b16 %v1312, %v1304
    %v1649 = vpack.c.b16 %v1313, %v1305
    %v1650 = vpack.c.b16 %v1314, %v1306
    %v1651 = vpack.c.b16 %v1315, %v1307
    %v1652 = vpack.c.b16 %v1316, %v1308
    %v1653 = vpack.c.b16 %v1317, %v1309
    %v1654 = vpack.c.b16 %v1318, %v1310
    %v1655 = vpack.c.b16 %v1327, %v1319
    %v1656 = vpack.c.b16 %v1328, %v1320
    %v1657 = vpack.c.b16 %v1329, %v1321
    %v1658 = vpack.c.b16 %v1330, %v1322
    %v1659 = vpack.c.b16 %v1331, %v1323
    %v1660 = vpack.c.b16 %v1332, %v1324
    %v1661 = vpack.c.b16 %v1333, %v1325
    %v1662 = vpack.c.b16 %v1334, %v1326
    %v1663 = vpack.c.b16 %v1343, %v1335
    %v1664 = vpack.c.b16 %v1344, %v1336
    %v1665 = vpack.c.b16 %v1345, %v1337
    %v1666 = vpack.c.b16 %v1346, %v1338
    %v1667 = vpack.c.b16 %v1347, %v1339
    %v1668 = vpack.c.b16 %v1348, %v1340
    %v1669 = vpack.c.b16 %v1349, %v1341
    %v1670 = vpack.c.b16 %v1350, %v1342
    %v1671 = vpack.c.b16 %v1359, %v1351
    %v1672 = vpack.c.b16 %v1360, %v1352
    %v1673 = vpack.c.b16 %v1361, %v1353
    %v1674 = vpack.c.b16 %v1362, %v1354
    %v1675 = vpack.c.b16 %v1363, %v1355
    %v1676 = vpack.c.b16 %v1364, %v1356
    %v1677 = vpack.c.b16 %v1365, %v1357
    %v1678 = vpack.c.b16 %v1366, %v1358
    %v1679 = vpack.c.b16 %v1375, %v1367
    %v1680 = vpack.c.b16 %v1376, %v1368
    %v1681 = vpack.c.b16 %v1377, %v1369
    %v1682 = vpack.c.b16 %v1378, %v1370
    %v1683 = vpack.c.b16 %v1379, %v1371
    %v1684 = vpack.c.b16 %v1380, %v1372
    %v1685 = vpack.c.b16 %v1381, %v1373
    %v1686 = vpack.c.b16 %v1382, %v1374
    %v1687 = vpack.c.b16 %v1391, %v1383
    %v1688 = vpack.c.b16 %v1392, %v1384
    %v1689 = vpack.c.b16 %v1393, %v1385
    %v1690 = vpack.c.b16 %v1394, %v1386
    %v1691 = vpack.c.b16 %v1395, %v1387
    %v1692 = vpack.c.b16 %v1396, %v1388
    %v1693 = vpack.c.b16 %v1397, %v1389
    %v1694 = vpack.c.b16 %v1398, %v1390
    %v1695 = vpack.c.b16 %v1407, %v1399
    %v1696 = vpack.c.b16 %v1408, %v1400
    %v1697 = vpack.c.b16 %v1409, %v1401
    %v1698 = vpack.c.b16 %v1410, %v1402
    %v1699 = vpack.c.b16 %v1411, %v1403
    %v1700 = vpack.c.b16 %v1412, %v1404
    %v1701 = vpack.c.b16 %v1413, %v1405
    %v1702 = vpack.c.b16 %v1414, %v1406
    %v1703 = vpack.c.b16 %v1423, %v1415
    %v1704 = vpack.c.b16 %v1424, %v1416
    %v1705 = vpack.c.b16 %v1425, %v1417
    %v1706 = vpack.c.b16 %v1426, %v1418
    %v1707 = vpack.c.b16 %v1427, %v1419
    %v1708 = vpack.c.b16 %v1428, %v1420
    %v1709 = vpack.c.b16 %v1429, %v1421
    %v1710 = vpack.c.b16 %v1430, %v1422
    %v1711 = vpack.c.b16 %v1439, %v1431
    %v1712 = vpack.c.b16 %v1440, %v1432
    %v1713 = vpack.c.b16 %v1441, %v1433
    %v1714 = vpack.c.b16 %v1442, %v1434
    %v1715 = vpack.c.b16 %v1443, %v1435
    %v1716 = vpack.c.b16 %v1444, %v1436
    %v1717 = vpack.c.b16 %v1445, %v1437
    %v1718 = vpack.c.b16 %v1446, %v1438
    %v1719 = vpack.c.b16 %v1455, %v1447
    %v1720 = vpack.c.b16 %v1456, %v1448
    %v1721 = vpack.c.b16 %v1457, %v1449
    %v1722 = vpack.c.b16 %v1458, %v1450
    %v1723 = vpack.c.b16 %v1459, %v1451
    %v1724 = vpack.c.b16 %v1460, %v1452
    %v1725 = vpack.c.b16 %v1461, %v1453
    %v1726 = vpack.c.b16 %v1462, %v1454
    %v1727 = vpack.c.b16 %v1471, %v1463
    %v1728 = vpack.c.b16 %v1472, %v1464
    %v1729 = vpack.c.b16 %v1473, %v1465
    %v1730 = vpack.c.b16 %v1474, %v1466
    %v1731 = vpack.c.b16 %v1475, %v1467
    %v1732 = vpack.c.b16 %v1476, %v1468
    %v1733 = vpack.c.b16 %v1477, %v1469
    %v1734 = vpack.c.b16 %v1478, %v1470
    %1991 = vmatprep.subr.bf16.mxu0 %v1480
    %1992 = vmatpush1.bf16.msra.mxu0 %v1479
    %1993 = vmatprep.subr.bf16.mxu0 %v1488
    %1994 = vmatpush1.bf16.msra.mxu0 %v1487
    %1995 = vmatprep.subr.bf16.mxu0 %v1496
    %1996 = vmatpush1.bf16.msra.mxu0 %v1495
    %1997 = vmatprep.subr.bf16.mxu0 %v1504
    %1998 = vmatpush1.bf16.msra.mxu0 %v1503
    %1999 = vmatprep.subr.bf16.mxu0 %v1512
    %2000 = vmatpush1.bf16.msra.mxu0 %v1511
    %2001 = vmatprep.subr.bf16.mxu0 %v1520
    %2002 = vmatpush1.bf16.msra.mxu0 %v1519
    %2003 = vmatprep.subr.bf16.mxu0 %v1528
    %2004 = vmatpush1.bf16.msra.mxu0 %v1527
    %2005 = vmatprep.subr.bf16.mxu0 %v1536
    %2006 = vmatpush1.bf16.msra.mxu0 %v1535
    %2007 = vmatprep.subr.bf16.mxu0 %v1544
    %2008 = vmatpush1.bf16.msra.mxu0 %v1543
    %2009 = vmatprep.subr.bf16.mxu0 %v1552
    %2010 = vmatpush1.bf16.msra.mxu0 %v1551
    %2011 = vmatprep.subr.bf16.mxu0 %v1560
    %2012 = vmatpush1.bf16.msra.mxu0 %v1559
    %2013 = vmatprep.subr.bf16.mxu0 %v1568
    %2014 = vmatpush1.bf16.msra.mxu0 %v1567
    %2015 = vmatprep.subr.bf16.mxu0 %v1576
    %2016 = vmatpush1.bf16.msra.mxu0 %v1575
    %2017 = vmatprep.subr.bf16.mxu0 %v1584
    %2018 = vmatpush1.bf16.msra.mxu0 %v1583
    %2019 = vmatprep.subr.bf16.mxu0 %v1592
    %2020 = vmatpush1.bf16.msra.mxu0 %v1591
    %2021 = vmatprep.subr.bf16.mxu0 %v1600
    %2022 = vmatpush1.bf16.msra.mxu0 %v1599
    %2023 = vmatprep.mubr.bf16.mxu0 %v410
    %2024 = vmatmul.mubr.bf16.gmra.mrb[0].mxu0 %v409
    %v2025 = vpop.f32.mrb[0].mxu0
    %v2026 = vadd.f32 %v674, %v2025
    %v2027 = vpop.f32.mrb[0].mxu0
    %v2028 = vadd.f32 %v678, %v2027
    %v2029 = vpop.f32.mrb[0].mxu0
    %v2030 = vpop.f32.mrb[0].mxu0
    %2031 = vdwg.mxu0
    %2032 = vmatprep.subr.bf16.mxu0 %v1608
    %2033 = vmatpush1.bf16.msra.mxu0 %v1607
    %2034 = vmatprep.subr.bf16.mxu0 %v1616
    %2035 = vmatpush1.bf16.msra.mxu0 %v1615
    %2036 = vmatprep.subr.bf16.mxu0 %v1624
    %2037 = vmatpush1.bf16.msra.mxu0 %v1623
    %2038 = vmatprep.subr.bf16.mxu0 %v1632
    %2039 = vmatpush1.bf16.msra.mxu0 %v1631
    %2040 = vmatprep.subr.bf16.mxu0 %v1640
    %2041 = vmatpush1.bf16.msra.mxu0 %v1639
    %2042 = vmatprep.subr.bf16.mxu0 %v1648
    %2043 = vmatpush1.bf16.msra.mxu0 %v1647
    %2044 = vmatprep.subr.bf16.mxu0 %v1656
    %2045 = vmatpush1.bf16.msra.mxu0 %v1655
    %2046 = vmatprep.subr.bf16.mxu0 %v1664
    %2047 = vmatpush1.bf16.msra.mxu0 %v1663
    %2048 = vmatprep.subr.bf16.mxu0 %v1672
    %2049 = vmatpush1.bf16.msra.mxu0 %v1671
    %2050 = vmatprep.subr.bf16.mxu0 %v1680
    %2051 = vmatpush1.bf16.msra.mxu0 %v1679
    %2052 = vmatprep.subr.bf16.mxu0 %v1688
    %2053 = vmatpush1.bf16.msra.mxu0 %v1687
    %2054 = vmatprep.subr.bf16.mxu0 %v1696
    %2055 = vmatpush1.bf16.msra.mxu0 %v1695
    %2056 = vmatprep.subr.bf16.mxu0 %v1704
    %2057 = vmatpush1.bf16.msra.mxu0 %v1703
    %2058 = vmatprep.subr.bf16.mxu0 %v1712
    %2059 = vmatpush1.bf16.msra.mxu0 %v1711
    %2060 = vmatprep.subr.bf16.mxu0 %v1720
    %2061 = vmatpush1.bf16.msra.mxu0 %v1719
    %2062 = vmatprep.subr.bf16.mxu0 %v1728
    %2063 = vmatpush1.bf16.msra.mxu0 %v1727
    %2064 = vmatprep.mubr.bf16.mxu0 %v412
    %2065 = vmatmul.mubr.bf16.gmra.mrb[0].mxu0 %v411
    %v2066 = vpop.f32.mrb[0].mxu0
    %v2067 = vadd.f32 %v2026, %v2066
    %v2068 = vpop.f32.mrb[0].mxu0
    %v2069 = vadd.f32 %v2028, %v2068
    %v2070 = vpop.f32.mrb[0].mxu0
    %v2071 = vpop.f32.mrb[0].mxu0
    %2072 = vdwg.mxu0
    %2073 = vmatprep.subr.bf16.mxu0 %v1482
    %2074 = vmatpush1.bf16.msra.mxu0 %v1481
    %2075 = vmatprep.subr.bf16.mxu0 %v1490
    %2076 = vmatpush1.bf16.msra.mxu0 %v1489
    %2077 = vmatprep.subr.bf16.mxu0 %v1498
    %2078 = vmatpush1.bf16.msra.mxu0 %v1497
    %2079 = vmatprep.subr.bf16.mxu0 %v1506
    %2080 = vmatpush1.bf16.msra.mxu0 %v1505
    %2081 = vmatprep.subr.bf16.mxu0 %v1514
    %2082 = vmatpush1.bf16.msra.mxu0 %v1513
    %2083 = vmatprep.subr.bf16.mxu0 %v1522
    %2084 = vmatpush1.bf16.msra.mxu0 %v1521
    %2085 = vmatprep.subr.bf16.mxu0 %v1530
    %2086 = vmatpush1.bf16.msra.mxu0 %v1529
    %2087 = vmatprep.subr.bf16.mxu0 %v1538
    %2088 = vmatpush1.bf16.msra.mxu0 %v1537
    %2089 = vmatprep.subr.bf16.mxu0 %v1546
    %2090 = vmatpush1.bf16.msra.mxu0 %v1545
    %2091 = vmatprep.subr.bf16.mxu0 %v1554
    %2092 = vmatpush1.bf16.msra.mxu0 %v1553
    %2093 = vmatprep.subr.bf16.mxu0 %v1562
    %2094 = vmatpush1.bf16.msra.mxu0 %v1561
    %2095 = vmatprep.subr.bf16.mxu0 %v1570
    %2096 = vmatpush1.bf16.msra.mxu0 %v1569
    %2097 = vmatprep.subr.bf16.mxu0 %v1578
    %2098 = vmatpush1.bf16.msra.mxu0 %v1577
    %2099 = vmatprep.subr.bf16.mxu0 %v1586
    %2100 = vmatpush1.bf16.msra.mxu0 %v1585
    %2101 = vmatprep.subr.bf16.mxu0 %v1594
    %2102 = vmatpush1.bf16.msra.mxu0 %v1593
    %2103 = vmatprep.subr.bf16.mxu0 %v1602
    %2104 = vmatpush1.bf16.msra.mxu0 %v1601
    %2105 = vmatprep.mubr.bf16.mxu0 %v410
    %2106 = vmatmul.mubr.bf16.gmra.mrb[0].mxu0 %v409
    %v2107 = vpop.f32.mrb[0].mxu0
    %v2108 = vadd.f32 %v682, %v2107
    %v2109 = vpop.f32.mrb[0].mxu0
    %v2110 = vadd.f32 %v686, %v2109
    %v2111 = vpop.f32.mrb[0].mxu0
    %v2112 = vpop.f32.mrb[0].mxu0
    %2113 = vdwg.mxu0
    %2114 = vmatprep.subr.bf16.mxu0 %v1610
    %2115 = vmatpush1.bf16.msra.mxu0 %v1609
    %2116 = vmatprep.subr.bf16.mxu0 %v1618
    %2117 = vmatpush1.bf16.msra.mxu0 %v1617
    %2118 = vmatprep.subr.bf16.mxu0 %v1626
    %2119 = vmatpush1.bf16.msra.mxu0 %v1625
    %2120 = vmatprep.subr.bf16.mxu0 %v1634
    %2121 = vmatpush1.bf16.msra.mxu0 %v1633
    %2122 = vmatprep.subr.bf16.mxu0 %v1642
    %2123 = vmatpush1.bf16.msra.mxu0 %v1641
    %2124 = vmatprep.subr.bf16.mxu0 %v1650
    %2125 = vmatpush1.bf16.msra.mxu0 %v1649
    %2126 = vmatprep.subr.bf16.mxu0 %v1658
    %2127 = vmatpush1.bf16.msra.mxu0 %v1657
    %2128 = vmatprep.subr.bf16.mxu0 %v1666
    %2129 = vmatpush1.bf16.msra.mxu0 %v1665
    %2130 = vmatprep.subr.bf16.mxu0 %v1674
    %2131 = vmatpush1.bf16.msra.mxu0 %v1673
    %2132 = vmatprep.subr.bf16.mxu0 %v1682
    %2133 = vmatpush1.bf16.msra.mxu0 %v1681
    %2134 = vmatprep.subr.bf16.mxu0 %v1690
    %2135 = vmatpush1.bf16.msra.mxu0 %v1689
    %2136 = vmatprep.subr.bf16.mxu0 %v1698
    %2137 = vmatpush1.bf16.msra.mxu0 %v1697
    %2138 = vmatprep.subr.bf16.mxu0 %v1706
    %2139 = vmatpush1.bf16.msra.mxu0 %v1705
    %2140 = vmatprep.subr.bf16.mxu0 %v1714
    %2141 = vmatpush1.bf16.msra.mxu0 %v1713
    %2142 = vmatprep.subr.bf16.mxu0 %v1722
    %2143 = vmatpush1.bf16.msra.mxu0 %v1721
    %2144 = vmatprep.subr.bf16.mxu0 %v1730
    %2145 = vmatpush1.bf16.msra.mxu0 %v1729
    %2146 = vmatprep.mubr.bf16.mxu0 %v412
    %2147 = vmatmul.mubr.bf16.gmra.mrb[0].mxu0 %v411
    %v2148 = vpop.f32.mrb[0].mxu0
    %v2149 = vadd.f32 %v2108, %v2148
    %v2150 = vpop.f32.mrb[0].mxu0
    %v2151 = vadd.f32 %v2110, %v2150
    %v2152 = vpop.f32.mrb[0].mxu0
    %v2153 = vpop.f32.mrb[0].mxu0
    %2154 = vdwg.mxu0
    %2155 = vmatprep.subr.bf16.mxu0 %v1484
    %2156 = vmatpush1.bf16.msra.mxu0 %v1483
    %2157 = vmatprep.subr.bf16.mxu0 %v1492
    %2158 = vmatpush1.bf16.msra.mxu0 %v1491
    %2159 = vmatprep.subr.bf16.mxu0 %v1500
    %2160 = vmatpush1.bf16.msra.mxu0 %v1499
    %2161 = vmatprep.subr.bf16.mxu0 %v1508
    %2162 = vmatpush1.bf16.msra.mxu0 %v1507
    %2163 = vmatprep.subr.bf16.mxu0 %v1516
    %2164 = vmatpush1.bf16.msra.mxu0 %v1515
    %2165 = vmatprep.subr.bf16.mxu0 %v1524
    %2166 = vmatpush1.bf16.msra.mxu0 %v1523
    %2167 = vmatprep.subr.bf16.mxu0 %v1532
    %2168 = vmatpush1.bf16.msra.mxu0 %v1531
    %2169 = vmatprep.subr.bf16.mxu0 %v1540
    %2170 = vmatpush1.bf16.msra.mxu0 %v1539
    %2171 = vmatprep.subr.bf16.mxu0 %v1548
    %2172 = vmatpush1.bf16.msra.mxu0 %v1547
    %2173 = vmatprep.subr.bf16.mxu0 %v1556
    %2174 = vmatpush1.bf16.msra.mxu0 %v1555
    %2175 = vmatprep.subr.bf16.mxu0 %v1564
    %2176 = vmatpush1.bf16.msra.mxu0 %v1563
    %2177 = vmatprep.subr.bf16.mxu0 %v1572
    %2178 = vmatpush1.bf16.msra.mxu0 %v1571
    %2179 = vmatprep.subr.bf16.mxu0 %v1580
    %2180 = vmatpush1.bf16.msra.mxu0 %v1579
    %2181 = vmatprep.subr.bf16.mxu0 %v1588
    %2182 = vmatpush1.bf16.msra.mxu0 %v1587
    %2183 = vmatprep.subr.bf16.mxu0 %v1596
    %2184 = vmatpush1.bf16.msra.mxu0 %v1595
    %2185 = vmatprep.subr.bf16.mxu0 %v1604
    %2186 = vmatpush1.bf16.msra.mxu0 %v1603
    %2187 = vmatprep.mubr.bf16.mxu0 %v410
    %2188 = vmatmul.mubr.bf16.gmra.mrb[0].mxu0 %v409
    %v2189 = vpop.f32.mrb[0].mxu0
    %v2190 = vadd.f32 %v690, %v2189
    %v2191 = vpop.f32.mrb[0].mxu0
    %v2192 = vadd.f32 %v694, %v2191
    %v2193 = vpop.f32.mrb[0].mxu0
    %v2194 = vpop.f32.mrb[0].mxu0
    %2195 = vdwg.mxu0
    %2196 = vmatprep.subr.bf16.mxu0 %v1612
    %2197 = vmatpush1.bf16.msra.mxu0 %v1611
    %2198 = vmatprep.subr.bf16.mxu0 %v1620
    %2199 = vmatpush1.bf16.msra.mxu0 %v1619
    %2200 = vmatprep.subr.bf16.mxu0 %v1628
    %2201 = vmatpush1.bf16.msra.mxu0 %v1627
    %2202 = vmatprep.subr.bf16.mxu0 %v1636
    %2203 = vmatpush1.bf16.msra.mxu0 %v1635
    %2204 = vmatprep.subr.bf16.mxu0 %v1644
    %2205 = vmatpush1.bf16.msra.mxu0 %v1643
    %2206 = vmatprep.subr.bf16.mxu0 %v1652
    %2207 = vmatpush1.bf16.msra.mxu0 %v1651
    %2208 = vmatprep.subr.bf16.mxu0 %v1660
    %2209 = vmatpush1.bf16.msra.mxu0 %v1659
    %2210 = vmatprep.subr.bf16.mxu0 %v1668
    %2211 = vmatpush1.bf16.msra.mxu0 %v1667
    %2212 = vmatprep.subr.bf16.mxu0 %v1676
    %2213 = vmatpush1.bf16.msra.mxu0 %v1675
    %2214 = vmatprep.subr.bf16.mxu0 %v1684
    %2215 = vmatpush1.bf16.msra.mxu0 %v1683
    %2216 = vmatprep.subr.bf16.mxu0 %v1692
    %2217 = vmatpush1.bf16.msra.mxu0 %v1691
    %2218 = vmatprep.subr.bf16.mxu0 %v1700
    %2219 = vmatpush1.bf16.msra.mxu0 %v1699
    %2220 = vmatprep.subr.bf16.mxu0 %v1708
    %2221 = vmatpush1.bf16.msra.mxu0 %v1707
    %2222 = vmatprep.subr.bf16.mxu0 %v1716
    %2223 = vmatpush1.bf16.msra.mxu0 %v1715
    %2224 = vmatprep.subr.bf16.mxu0 %v1724
    %2225 = vmatpush1.bf16.msra.mxu0 %v1723
    %2226 = vmatprep.subr.bf16.mxu0 %v1732
    %2227 = vmatpush1.bf16.msra.mxu0 %v1731
    %2228 = vmatprep.mubr.bf16.mxu0 %v412
    %2229 = vmatmul.mubr.bf16.gmra.mrb[0].mxu0 %v411
    %v2230 = vpop.f32.mrb[0].mxu0
    %v2231 = vadd.f32 %v2190, %v2230
    %v2232 = vpop.f32.mrb[0].mxu0
    %v2233 = vadd.f32 %v2192, %v2232
    %v2234 = vpop.f32.mrb[0].mxu0
    %v2235 = vpop.f32.mrb[0].mxu0
    %2236 = vdwg.mxu0
    %2237 = vmatprep.subr.bf16.mxu0 %v1486
    %2238 = vmatpush1.bf16.msra.mxu0 %v1485
    %2239 = vmatprep.subr.bf16.mxu0 %v1494
    %2240 = vmatpush1.bf16.msra.mxu0 %v1493
    %2241 = vmatprep.subr.bf16.mxu0 %v1502
    %2242 = vmatpush1.bf16.msra.mxu0 %v1501
    %2243 = vmatprep.subr.bf16.mxu0 %v1510
    %2244 = vmatpush1.bf16.msra.mxu0 %v1509
    %2245 = vmatprep.subr.bf16.mxu0 %v1518
    %2246 = vmatpush1.bf16.msra.mxu0 %v1517
    %2247 = vmatprep.subr.bf16.mxu0 %v1526
    %2248 = vmatpush1.bf16.msra.mxu0 %v1525
    %2249 = vmatprep.subr.bf16.mxu0 %v1534
    %2250 = vmatpush1.bf16.msra.mxu0 %v1533
    %2251 = vmatprep.subr.bf16.mxu0 %v1542
    %2252 = vmatpush1.bf16.msra.mxu0 %v1541
    %2253 = vmatprep.subr.bf16.mxu0 %v1550
    %2254 = vmatpush1.bf16.msra.mxu0 %v1549
    %2255 = vmatprep.subr.bf16.mxu0 %v1558
    %2256 = vmatpush1.bf16.msra.mxu0 %v1557
    %2257 = vmatprep.subr.bf16.mxu0 %v1566
    %2258 = vmatpush1.bf16.msra.mxu0 %v1565
    %2259 = vmatprep.subr.bf16.mxu0 %v1574
    %2260 = vmatpush1.bf16.msra.mxu0 %v1573
    %2261 = vmatprep.subr.bf16.mxu0 %v1582
    %2262 = vmatpush1.bf16.msra.mxu0 %v1581
    %2263 = vmatprep.subr.bf16.mxu0 %v1590
    %2264 = vmatpush1.bf16.msra.mxu0 %v1589
    %2265 = vmatprep.subr.bf16.mxu0 %v1598
    %2266 = vmatpush1.bf16.msra.mxu0 %v1597
    %2267 = vmatprep.subr.bf16.mxu0 %v1606
    %2268 = vmatpush1.bf16.msra.mxu0 %v1605
    %2269 = vmatprep.mubr.bf16.mxu0 %v410
    %2270 = vmatmul.mubr.bf16.gmra.mrb[0].mxu0 %v409
    %v2271 = vpop.f32.mrb[0].mxu0
    %v2272 = vadd.f32 %v698, %v2271
    %v2273 = vpop.f32.mrb[0].mxu0
    %v2274 = vadd.f32 %v702, %v2273
    %v2275 = vpop.f32.mrb[0].mxu0
    %v2276 = vpop.f32.mrb[0].mxu0
    %2277 = vdwg.mxu0
    %2278 = vmatprep.subr.bf16.mxu0 %v1614
    %2279 = vmatpush1.bf16.msra.mxu0 %v1613
    %2280 = vmatprep.subr.bf16.mxu0 %v1622
    %2281 = vmatpush1.bf16.msra.mxu0 %v1621
    %2282 = vmatprep.subr.bf16.mxu0 %v1630
    %2283 = vmatpush1.bf16.msra.mxu0 %v1629
    %2284 = vmatprep.subr.bf16.mxu0 %v1638
    %2285 = vmatpush1.bf16.msra.mxu0 %v1637
    %2286 = vmatprep.subr.bf16.mxu0 %v1646
    %2287 = vmatpush1.bf16.msra.mxu0 %v1645
    %2288 = vmatprep.subr.bf16.mxu0 %v1654
    %2289 = vmatpush1.bf16.msra.mxu0 %v1653
    %2290 = vmatprep.subr.bf16.mxu0 %v1662
    %2291 = vmatpush1.bf16.msra.mxu0 %v1661
    %2292 = vmatprep.subr.bf16.mxu0 %v1670
    %2293 = vmatpush1.bf16.msra.mxu0 %v1669
    %2294 = vmatprep.subr.bf16.mxu0 %v1678
    %2295 = vmatpush1.bf16.msra.mxu0 %v1677
    %2296 = vmatprep.subr.bf16.mxu0 %v1686
    %2297 = vmatpush1.bf16.msra.mxu0 %v1685
    %2298 = vmatprep.subr.bf16.mxu0 %v1694
    %2299 = vmatpush1.bf16.msra.mxu0 %v1693
    %2300 = vmatprep.subr.bf16.mxu0 %v1702
    %2301 = vmatpush1.bf16.msra.mxu0 %v1701
    %2302 = vmatprep.subr.bf16.mxu0 %v1710
    %2303 = vmatpush1.bf16.msra.mxu0 %v1709
    %2304 = vmatprep.subr.bf16.mxu0 %v1718
    %2305 = vmatpush1.bf16.msra.mxu0 %v1717
    %2306 = vmatprep.subr.bf16.mxu0 %v1726
    %2307 = vmatpush1.bf16.msra.mxu0 %v1725
    %2308 = vmatprep.subr.bf16.mxu0 %v1734
    %2309 = vmatpush1.bf16.msra.mxu0 %v1733
    %2310 = vmatprep.mubr.bf16.mxu0 %v412
    %2311 = vmatmul.mubr.bf16.gmra.mrb[0].mxu0 %v411
    %v2312 = vpop.f32.mrb[0].mxu0
    %v2313 = vadd.f32 %v2272, %v2312
    %v2314 = vpop.f32.mrb[0].mxu0
    %v2315 = vadd.f32 %v2274, %v2314
    %v2316 = vpop.f32.mrb[0].mxu0
    %v2317 = vpop.f32.mrb[0].mxu0
    %2318 = vdwg.mxu0
    %v2319 = vmax.f32 %v2067, 0.0
    %v2320 = vmax.f32 %v2069, 0.0
    %v2321 = vmax.f32 %v2149, 0.0
    %v2322 = vmax.f32 %v2151, 0.0
    %v2323 = vmax.f32 %v2231, 0.0
    %v2324 = vmax.f32 %v2233, 0.0
    %v2325 = vmax.f32 %v2313, 0.0
    %v2326 = vmax.f32 %v2315, 0.0
    %v2327 = vpack.c.bf16 %v2319, %v2319
    %v2328 = vpack.c.bf16 %v2320, %v2320
    %v2329 = vpack.c.bf16 %v2321, %v2321
    %v2330 = vpack.c.bf16 %v2322, %v2322
    %v2331 = vpack.c.bf16 %v2323, %v2323
    %v2332 = vpack.c.bf16 %v2324, %v2324
    %v2333 = vpack.c.bf16 %v2325, %v2325
    %v2334 = vpack.c.bf16 %v2326, %v2326
    %v2335 = vld [vmem:[#allocation4] sm:$0xf]
    %v2336 = vld [vmem:[#allocation4 + $0x4] sm:$0xf]
    %v2337 = vld [vmem:[#allocation4 + $0x8] sm:$0xf]
    %v2338 = vld [vmem:[#allocation4 + $0xc] sm:$0xf]
    %v2339 = vld [vmem:[#allocation4 + $0x10] sm:$0xf]
    %v2340 = vld [vmem:[#allocation4 + $0x14] sm:$0xf]
    %v2341 = vld [vmem:[#allocation4 + $0x18] sm:$0xf]
    %v2342 = vld [vmem:[#allocation4 + $0x1c] sm:$0xf]
    %v2343 = vld [vmem:[#allocation4 + $0x20] sm:$0xf]
    %v2344 = vld [vmem:[#allocation4 + $0x24] sm:$0xf]
    %v2345 = vld [vmem:[#allocation4 + $0x28] sm:$0xf]
    %v2346 = vld [vmem:[#allocation4 + $0x2c] sm:$0xf]
    %v2347 = vld [vmem:[#allocation4 + $0x30] sm:$0xf]
    %v2348 = vld [vmem:[#allocation4 + $0x34] sm:$0xf]
    %v2349 = vld [vmem:[#allocation4 + $0x38] sm:$0xf]
    %v2350 = vld [vmem:[#allocation4 + $0x3c] sm:$0xf]
    %v2351 = vld [vmem:[#allocation4 + $0x40] sm:$0xf]
    %v2352 = vld [vmem:[#allocation4 + $0x44] sm:$0xf]
    %v2353 = vld [vmem:[#allocation4 + $0x48] sm:$0xf]
    %v2354 = vld [vmem:[#allocation4 + $0x4c] sm:$0xf]
    %v2355 = vld [vmem:[#allocation4 + $0x50] sm:$0xf]
    %v2356 = vld [vmem:[#allocation4 + $0x54] sm:$0xf]
    %v2357 = vld [vmem:[#allocation4 + $0x58] sm:$0xf]
    %v2358 = vld [vmem:[#allocation4 + $0x5c] sm:$0xf]
    %v2359 = vld [vmem:[#allocation4 + $0x60] sm:$0xf]
    %v2360 = vld [vmem:[#allocation4 + $0x64] sm:$0xf]
    %v2361 = vld [vmem:[#allocation4 + $0x68] sm:$0xf]
    %v2362 = vld [vmem:[#allocation4 + $0x6c] sm:$0xf]
    %v2363 = vld [vmem:[#allocation4 + $0x70] sm:$0xf]
    %v2364 = vld [vmem:[#allocation4 + $0x74] sm:$0xf]
    %v2365 = vld [vmem:[#allocation4 + $0x78] sm:$0xf]
    %v2366 = vld [vmem:[#allocation4 + $0x7c] sm:$0xf]
    %v2367 = vld [vmem:[#allocation4 + $0x80] sm:$0xf]
    %v2368 = vld [vmem:[#allocation4 + $0x84] sm:$0xf]
    %v2369 = vld [vmem:[#allocation4 + $0x88] sm:$0xf]
    %v2370 = vld [vmem:[#allocation4 + $0x8c] sm:$0xf]
    %v2371 = vld [vmem:[#allocation4 + $0x90] sm:$0xf]
    %v2372 = vld [vmem:[#allocation4 + $0x94] sm:$0xf]
    %v2373 = vld [vmem:[#allocation4 + $0x98] sm:$0xf]
    %v2374 = vld [vmem:[#allocation4 + $0x9c] sm:$0xf]
    %v2375 = vld [vmem:[#allocation4 + $0xa0] sm:$0xf]
    %v2376 = vld [vmem:[#allocation4 + $0xa4] sm:$0xf]
    %v2377 = vld [vmem:[#allocation4 + $0xa8] sm:$0xf]
    %v2378 = vld [vmem:[#allocation4 + $0xac] sm:$0xf]
    %v2379 = vld [vmem:[#allocation4 + $0xb0] sm:$0xf]
    %v2380 = vld [vmem:[#allocation4 + $0xb4] sm:$0xf]
    %v2381 = vld [vmem:[#allocation4 + $0xb8] sm:$0xf]
    %v2382 = vld [vmem:[#allocation4 + $0xbc] sm:$0xf]
    %v2383 = vld [vmem:[#allocation4 + $0xc0] sm:$0xf]
    %v2384 = vld [vmem:[#allocation4 + $0xc4] sm:$0xf]
    %v2385 = vld [vmem:[#allocation4 + $0xc8] sm:$0xf]
    %v2386 = vld [vmem:[#allocation4 + $0xcc] sm:$0xf]
    %v2387 = vld [vmem:[#allocation4 + $0xd0] sm:$0xf]
    %v2388 = vld [vmem:[#allocation4 + $0xd4] sm:$0xf]
    %v2389 = vld [vmem:[#allocation4 + $0xd8] sm:$0xf]
    %v2390 = vld [vmem:[#allocation4 + $0xdc] sm:$0xf]
    %v2391 = vld [vmem:[#allocation4 + $0xe0] sm:$0xf]
    %v2392 = vld [vmem:[#allocation4 + $0xe4] sm:$0xf]
    %v2393 = vld [vmem:[#allocation4 + $0xe8] sm:$0xf]
    %v2394 = vld [vmem:[#allocation4 + $0xec] sm:$0xf]
    %v2395 = vld [vmem:[#allocation4 + $0xf0] sm:$0xf]
    %v2396 = vld [vmem:[#allocation4 + $0xf4] sm:$0xf]
    %v2397 = vld [vmem:[#allocation4 + $0xf8] sm:$0xf]
    %v2398 = vld [vmem:[#allocation4 + $0xfc] sm:$0xf]
    %v2399 = vld [vmem:[#allocation4 + $0x100] sm:$0xf]
    %v2400 = vld [vmem:[#allocation4 + $0x104] sm:$0xf]
    %v2401 = vld [vmem:[#allocation4 + $0x108] sm:$0xf]
    %v2402 = vld [vmem:[#allocation4 + $0x10c] sm:$0xf]
    %v2403 = vld [vmem:[#allocation4 + $0x110] sm:$0xf]
    %v2404 = vld [vmem:[#allocation4 + $0x114] sm:$0xf]
    %v2405 = vld [vmem:[#allocation4 + $0x118] sm:$0xf]
    %v2406 = vld [vmem:[#allocation4 + $0x11c] sm:$0xf]
    %v2407 = vld [vmem:[#allocation4 + $0x120] sm:$0xf]
    %v2408 = vld [vmem:[#allocation4 + $0x124] sm:$0xf]
    %v2409 = vld [vmem:[#allocation4 + $0x128] sm:$0xf]
    %v2410 = vld [vmem:[#allocation4 + $0x12c] sm:$0xf]
    %v2411 = vld [vmem:[#allocation4 + $0x130] sm:$0xf]
    %v2412 = vld [vmem:[#allocation4 + $0x134] sm:$0xf]
    %v2413 = vld [vmem:[#allocation4 + $0x138] sm:$0xf]
    %v2414 = vld [vmem:[#allocation4 + $0x13c] sm:$0xf]
    %v2415 = vld [vmem:[#allocation4 + $0x140] sm:$0xf]
    %v2416 = vld [vmem:[#allocation4 + $0x144] sm:$0xf]
    %v2417 = vld [vmem:[#allocation4 + $0x148] sm:$0xf]
    %v2418 = vld [vmem:[#allocation4 + $0x14c] sm:$0xf]
    %v2419 = vld [vmem:[#allocation4 + $0x150] sm:$0xf]
    %v2420 = vld [vmem:[#allocation4 + $0x154] sm:$0xf]
    %v2421 = vld [vmem:[#allocation4 + $0x158] sm:$0xf]
    %v2422 = vld [vmem:[#allocation4 + $0x15c] sm:$0xf]
    %v2423 = vld [vmem:[#allocation4 + $0x160] sm:$0xf]
    %v2424 = vld [vmem:[#allocation4 + $0x164] sm:$0xf]
    %v2425 = vld [vmem:[#allocation4 + $0x168] sm:$0xf]
    %v2426 = vld [vmem:[#allocation4 + $0x16c] sm:$0xf]
    %v2427 = vld [vmem:[#allocation4 + $0x170] sm:$0xf]
    %v2428 = vld [vmem:[#allocation4 + $0x174] sm:$0xf]
    %v2429 = vld [vmem:[#allocation4 + $0x178] sm:$0xf]
    %v2430 = vld [vmem:[#allocation4 + $0x17c] sm:$0xf]
    %v2431 = vld [vmem:[#allocation4 + $0x180] sm:$0xf]
    %v2432 = vld [vmem:[#allocation4 + $0x184] sm:$0xf]
    %v2433 = vld [vmem:[#allocation4 + $0x188] sm:$0xf]
    %v2434 = vld [vmem:[#allocation4 + $0x18c] sm:$0xf]
    %v2435 = vld [vmem:[#allocation4 + $0x190] sm:$0xf]
    %v2436 = vld [vmem:[#allocation4 + $0x194] sm:$0xf]
    %v2437 = vld [vmem:[#allocation4 + $0x198] sm:$0xf]
    %v2438 = vld [vmem:[#allocation4 + $0x19c] sm:$0xf]
    %v2439 = vld [vmem:[#allocation4 + $0x1a0] sm:$0xf]
    %v2440 = vld [vmem:[#allocation4 + $0x1a4] sm:$0xf]
    %v2441 = vld [vmem:[#allocation4 + $0x1a8] sm:$0xf]
    %v2442 = vld [vmem:[#allocation4 + $0x1ac] sm:$0xf]
    %v2443 = vld [vmem:[#allocation4 + $0x1b0] sm:$0xf]
    %v2444 = vld [vmem:[#allocation4 + $0x1b4] sm:$0xf]
    %v2445 = vld [vmem:[#allocation4 + $0x1b8] sm:$0xf]
    %v2446 = vld [vmem:[#allocation4 + $0x1bc] sm:$0xf]
    %v2447 = vld [vmem:[#allocation4 + $0x1c0] sm:$0xf]
    %v2448 = vld [vmem:[#allocation4 + $0x1c4] sm:$0xf]
    %v2449 = vld [vmem:[#allocation4 + $0x1c8] sm:$0xf]
    %v2450 = vld [vmem:[#allocation4 + $0x1cc] sm:$0xf]
    %v2451 = vld [vmem:[#allocation4 + $0x1d0] sm:$0xf]
    %v2452 = vld [vmem:[#allocation4 + $0x1d4] sm:$0xf]
    %v2453 = vld [vmem:[#allocation4 + $0x1d8] sm:$0xf]
    %v2454 = vld [vmem:[#allocation4 + $0x1dc] sm:$0xf]
    %v2455 = vld [vmem:[#allocation4 + $0x1e0] sm:$0xf]
    %v2456 = vld [vmem:[#allocation4 + $0x1e4] sm:$0xf]
    %v2457 = vld [vmem:[#allocation4 + $0x1e8] sm:$0xf]
    %v2458 = vld [vmem:[#allocation4 + $0x1ec] sm:$0xf]
    %v2459 = vld [vmem:[#allocation4 + $0x1f0] sm:$0xf]
    %v2460 = vld [vmem:[#allocation4 + $0x1f4] sm:$0xf]
    %v2461 = vld [vmem:[#allocation4 + $0x1f8] sm:$0xf]
    %v2462 = vld [vmem:[#allocation4 + $0x1fc] sm:$0xf]
    %v2463 = vld [vmem:[%s6] sm:$0x1]
    %v2465 = vlaneseq
    %v2466 = vshrl.u32 %v2465, 7
    %v2467 = vsub.s32 0, %v2466
    %v2468 = vrot.slane %v2463, %v2467
    %v2598 = vunpack.c.l.b16 %v2335
    %v2599 = vunpack.c.l.b16 %v2336
    %v2600 = vunpack.c.l.b16 %v2337
    %v2601 = vunpack.c.l.b16 %v2338
    %v2602 = vunpack.c.l.b16 %v2339
    %v2603 = vunpack.c.l.b16 %v2340
    %v2604 = vunpack.c.l.b16 %v2341
    %v2605 = vunpack.c.l.b16 %v2342
    %v2606 = vunpack.c.l.b16 %v2343
    %v2607 = vunpack.c.l.b16 %v2344
    %v2608 = vunpack.c.l.b16 %v2345
    %v2609 = vunpack.c.l.b16 %v2346
    %v2610 = vunpack.c.l.b16 %v2347
    %v2611 = vunpack.c.l.b16 %v2348
    %v2612 = vunpack.c.l.b16 %v2349
    %v2613 = vunpack.c.l.b16 %v2350
    %v2614 = vunpack.c.l.b16 %v2351
    %v2615 = vunpack.c.l.b16 %v2352
    %v2616 = vunpack.c.l.b16 %v2353
    %v2617 = vunpack.c.l.b16 %v2354
    %v2618 = vunpack.c.l.b16 %v2355
    %v2619 = vunpack.c.l.b16 %v2356
    %v2620 = vunpack.c.l.b16 %v2357
    %v2621 = vunpack.c.l.b16 %v2358
    %v2622 = vunpack.c.l.b16 %v2359
    %v2623 = vunpack.c.l.b16 %v2360
    %v2624 = vunpack.c.l.b16 %v2361
    %v2625 = vunpack.c.l.b16 %v2362
    %v2626 = vunpack.c.l.b16 %v2363
    %v2627 = vunpack.c.l.b16 %v2364
    %v2628 = vunpack.c.l.b16 %v2365
    %v2629 = vunpack.c.l.b16 %v2366
    %v2630 = vunpack.c.l.b16 %v2367
    %v2631 = vunpack.c.l.b16 %v2368
    %v2632 = vunpack.c.l.b16 %v2369
    %v2633 = vunpack.c.l.b16 %v2370
    %v2634 = vunpack.c.l.b16 %v2371
    %v2635 = vunpack.c.l.b16 %v2372
    %v2636 = vunpack.c.l.b16 %v2373
    %v2637 = vunpack.c.l.b16 %v2374
    %v2638 = vunpack.c.l.b16 %v2375
    %v2639 = vunpack.c.l.b16 %v2376
    %v2640 = vunpack.c.l.b16 %v2377
    %v2641 = vunpack.c.l.b16 %v2378
    %v2642 = vunpack.c.l.b16 %v2379
    %v2643 = vunpack.c.l.b16 %v2380
    %v2644 = vunpack.c.l.b16 %v2381
    %v2645 = vunpack.c.l.b16 %v2382
    %v2646 = vunpack.c.l.b16 %v2383
    %v2647 = vunpack.c.l.b16 %v2384
    %v2648 = vunpack.c.l.b16 %v2385
    %v2649 = vunpack.c.l.b16 %v2386
    %v2650 = vunpack.c.l.b16 %v2387
    %v2651 = vunpack.c.l.b16 %v2388
    %v2652 = vunpack.c.l.b16 %v2389
    %v2653 = vunpack.c.l.b16 %v2390
    %v2654 = vunpack.c.l.b16 %v2391
    %v2655 = vunpack.c.l.b16 %v2392
    %v2656 = vunpack.c.l.b16 %v2393
    %v2657 = vunpack.c.l.b16 %v2394
    %v2658 = vunpack.c.l.b16 %v2395
    %v2659 = vunpack.c.l.b16 %v2396
    %v2660 = vunpack.c.l.b16 %v2397
    %v2661 = vunpack.c.l.b16 %v2398
    %v2662 = vunpack.c.l.b16 %v2399
    %v2663 = vunpack.c.l.b16 %v2400
    %v2664 = vunpack.c.l.b16 %v2401
    %v2665 = vunpack.c.l.b16 %v2402
    %v2666 = vunpack.c.l.b16 %v2403
    %v2667 = vunpack.c.l.b16 %v2404
    %v2668 = vunpack.c.l.b16 %v2405
    %v2669 = vunpack.c.l.b16 %v2406
    %v2670 = vunpack.c.l.b16 %v2407
    %v2671 = vunpack.c.l.b16 %v2408
    %v2672 = vunpack.c.l.b16 %v2409
    %v2673 = vunpack.c.l.b16 %v2410
    %v2674 = vunpack.c.l.b16 %v2411
    %v2675 = vunpack.c.l.b16 %v2412
    %v2676 = vunpack.c.l.b16 %v2413
    %v2677 = vunpack.c.l.b16 %v2414
    %v2678 = vunpack.c.l.b16 %v2415
    %v2679 = vunpack.c.l.b16 %v2416
    %v2680 = vunpack.c.l.b16 %v2417
    %v2681 = vunpack.c.l.b16 %v2418
    %v2682 = vunpack.c.l.b16 %v2419
    %v2683 = vunpack.c.l.b16 %v2420
    %v2684 = vunpack.c.l.b16 %v2421
    %v2685 = vunpack.c.l.b16 %v2422
    %v2686 = vunpack.c.l.b16 %v2423
    %v2687 = vunpack.c.l.b16 %v2424
    %v2688 = vunpack.c.l.b16 %v2425
    %v2689 = vunpack.c.l.b16 %v2426
    %v2690 = vunpack.c.l.b16 %v2427
    %v2691 = vunpack.c.l.b16 %v2428
    %v2692 = vunpack.c.l.b16 %v2429
    %v2693 = vunpack.c.l.b16 %v2430
    %v2694 = vunpack.c.l.b16 %v2431
    %v2695 = vunpack.c.l.b16 %v2432
    %v2696 = vunpack.c.l.b16 %v2433
    %v2697 = vunpack.c.l.b16 %v2434
    %v2698 = vunpack.c.l.b16 %v2435
    %v2699 = vunpack.c.l.b16 %v2436
    %v2700 = vunpack.c.l.b16 %v2437
    %v2701 = vunpack.c.l.b16 %v2438
    %v2702 = vunpack.c.l.b16 %v2439
    %v2703 = vunpack.c.l.b16 %v2440
    %v2704 = vunpack.c.l.b16 %v2441
    %v2705 = vunpack.c.l.b16 %v2442
    %v2706 = vunpack.c.l.b16 %v2443
    %v2707 = vunpack.c.l.b16 %v2444
    %v2708 = vunpack.c.l.b16 %v2445
    %v2709 = vunpack.c.l.b16 %v2446
    %v2710 = vunpack.c.l.b16 %v2447
    %v2711 = vunpack.c.l.b16 %v2448
    %v2712 = vunpack.c.l.b16 %v2449
    %v2713 = vunpack.c.l.b16 %v2450
    %v2714 = vunpack.c.l.b16 %v2451
    %v2715 = vunpack.c.l.b16 %v2452
    %v2716 = vunpack.c.l.b16 %v2453
    %v2717 = vunpack.c.l.b16 %v2454
    %v2718 = vunpack.c.l.b16 %v2455
    %v2719 = vunpack.c.l.b16 %v2456
    %v2720 = vunpack.c.l.b16 %v2457
    %v2721 = vunpack.c.l.b16 %v2458
    %v2722 = vunpack.c.l.b16 %v2459
    %v2723 = vunpack.c.l.b16 %v2460
    %v2724 = vunpack.c.l.b16 %v2461
    %v2725 = vunpack.c.l.b16 %v2462
    %v2726 = vpack.c.b16 %v2599, %v2598
    %v2727 = vpack.c.b16 %v2601, %v2600
    %v2728 = vpack.c.b16 %v2603, %v2602
    %v2729 = vpack.c.b16 %v2605, %v2604
    %v2730 = vpack.c.b16 %v2607, %v2606
    %v2731 = vpack.c.b16 %v2609, %v2608
    %v2732 = vpack.c.b16 %v2611, %v2610
    %v2733 = vpack.c.b16 %v2613, %v2612
    %v2734 = vpack.c.b16 %v2615, %v2614
    %v2735 = vpack.c.b16 %v2617, %v2616
    %v2736 = vpack.c.b16 %v2619, %v2618
    %v2737 = vpack.c.b16 %v2621, %v2620
    %v2738 = vpack.c.b16 %v2623, %v2622
    %v2739 = vpack.c.b16 %v2625, %v2624
    %v2740 = vpack.c.b16 %v2627, %v2626
    %v2741 = vpack.c.b16 %v2629, %v2628
    %v2742 = vpack.c.b16 %v2631, %v2630
    %v2743 = vpack.c.b16 %v2633, %v2632
    %v2744 = vpack.c.b16 %v2635, %v2634
    %v2745 = vpack.c.b16 %v2637, %v2636
    %v2746 = vpack.c.b16 %v2639, %v2638
    %v2747 = vpack.c.b16 %v2641, %v2640
    %v2748 = vpack.c.b16 %v2643, %v2642
    %v2749 = vpack.c.b16 %v2645, %v2644
    %v2750 = vpack.c.b16 %v2647, %v2646
    %v2751 = vpack.c.b16 %v2649, %v2648
    %v2752 = vpack.c.b16 %v2651, %v2650
    %v2753 = vpack.c.b16 %v2653, %v2652
    %v2754 = vpack.c.b16 %v2655, %v2654
    %v2755 = vpack.c.b16 %v2657, %v2656
    %v2756 = vpack.c.b16 %v2659, %v2658
    %v2757 = vpack.c.b16 %v2661, %v2660
    %v2758 = vpack.c.b16 %v2663, %v2662
    %v2759 = vpack.c.b16 %v2665, %v2664
    %v2760 = vpack.c.b16 %v2667, %v2666
    %v2761 = vpack.c.b16 %v2669, %v2668
    %v2762 = vpack.c.b16 %v2671, %v2670
    %v2763 = vpack.c.b16 %v2673, %v2672
    %v2764 = vpack.c.b16 %v2675, %v2674
    %v2765 = vpack.c.b16 %v2677, %v2676
    %v2766 = vpack.c.b16 %v2679, %v2678
    %v2767 = vpack.c.b16 %v2681, %v2680
    %v2768 = vpack.c.b16 %v2683, %v2682
    %v2769 = vpack.c.b16 %v2685, %v2684
    %v2770 = vpack.c.b16 %v2687, %v2686
    %v2771 = vpack.c.b16 %v2689, %v2688
    %v2772 = vpack.c.b16 %v2691, %v2690
    %v2773 = vpack.c.b16 %v2693, %v2692
    %v2774 = vpack.c.b16 %v2695, %v2694
    %v2775 = vpack.c.b16 %v2697, %v2696
    %v2776 = vpack.c.b16 %v2699, %v2698
    %v2777 = vpack.c.b16 %v2701, %v2700
    %v2778 = vpack.c.b16 %v2703, %v2702
    %v2779 = vpack.c.b16 %v2705, %v2704
    %v2780 = vpack.c.b16 %v2707, %v2706
    %v2781 = vpack.c.b16 %v2709, %v2708
    %v2782 = vpack.c.b16 %v2711, %v2710
    %v2783 = vpack.c.b16 %v2713, %v2712
    %v2784 = vpack.c.b16 %v2715, %v2714
    %v2785 = vpack.c.b16 %v2717, %v2716
    %v2786 = vpack.c.b16 %v2719, %v2718
    %v2787 = vpack.c.b16 %v2721, %v2720
    %v2788 = vpack.c.b16 %v2723, %v2722
    %v2789 = vpack.c.b16 %v2725, %v2724
    %2854 = vmatprep.subr.bf16.mxu0 0
    %2855 = vmatpush1.bf16.msra.mxu0 %v2726
    %2856 = vmatprep.subr.bf16.mxu0 0
    %2857 = vmatpush1.bf16.msra.mxu0 %v2727
    %2858 = vmatprep.subr.bf16.mxu0 0
    %2859 = vmatpush1.bf16.msra.mxu0 %v2728
    %2860 = vmatprep.subr.bf16.mxu0 0
    %2861 = vmatpush1.bf16.msra.mxu0 %v2729
    %2862 = vmatprep.subr.bf16.mxu0 0
    %2863 = vmatpush1.bf16.msra.mxu0 %v2730
    %2864 = vmatprep.subr.bf16.mxu0 0
    %2865 = vmatpush1.bf16.msra.mxu0 %v2731
    %2866 = vmatprep.subr.bf16.mxu0 0
    %2867 = vmatpush1.bf16.msra.mxu0 %v2732
    %2868 = vmatprep.subr.bf16.mxu0 0
    %2869 = vmatpush1.bf16.msra.mxu0 %v2733
    %2870 = vmatprep.subr.bf16.mxu0 0
    %2871 = vmatpush1.bf16.msra.mxu0 %v2734
    %2872 = vmatprep.subr.bf16.mxu0 0
    %2873 = vmatpush1.bf16.msra.mxu0 %v2735
    %2874 = vmatprep.subr.bf16.mxu0 0
    %2875 = vmatpush1.bf16.msra.mxu0 %v2736
    %2876 = vmatprep.subr.bf16.mxu0 0
    %2877 = vmatpush1.bf16.msra.mxu0 %v2737
    %2878 = vmatprep.subr.bf16.mxu0 0
    %2879 = vmatpush1.bf16.msra.mxu0 %v2738
    %2880 = vmatprep.subr.bf16.mxu0 0
    %2881 = vmatpush1.bf16.msra.mxu0 %v2739
    %2882 = vmatprep.subr.bf16.mxu0 0
    %2883 = vmatpush1.bf16.msra.mxu0 %v2740
    %2884 = vmatprep.subr.bf16.mxu0 0
    %2885 = vmatpush1.bf16.msra.mxu0 %v2741
    %2886 = vmatprep.mubr.bf16.mxu0 %v2328
    %2887 = vmatmul.mubr.bf16.gmra.mrb[0].mxu0 %v2327
    %v2888 = vpop.f32.mrb[0].mxu0
    %v2889 = vadd.f32 %v2468, %v2888
    %v2890 = vpop.f32.mrb[0].mxu0
    %v2891 = vpop.f32.mrb[0].mxu0
    %v2892 = vpop.f32.mrb[0].mxu0
    %2893 = vdwg.mxu0
    %2894 = vmatprep.subr.bf16.mxu0 0
    %2895 = vmatpush1.bf16.msra.mxu0 %v2742
    %2896 = vmatprep.subr.bf16.mxu0 0
    %2897 = vmatpush1.bf16.msra.mxu0 %v2743
    %2898 = vmatprep.subr.bf16.mxu0 0
    %2899 = vmatpush1.bf16.msra.mxu0 %v2744
    %2900 = vmatprep.subr.bf16.mxu0 0
    %2901 = vmatpush1.bf16.msra.mxu0 %v2745
    %2902 = vmatprep.subr.bf16.mxu0 0
    %2903 = vmatpush1.bf16.msra.mxu0 %v2746
    %2904 = vmatprep.subr.bf16.mxu0 0
    %2905 = vmatpush1.bf16.msra.mxu0 %v2747
    %2906 = vmatprep.subr.bf16.mxu0 0
    %2907 = vmatpush1.bf16.msra.mxu0 %v2748
    %2908 = vmatprep.subr.bf16.mxu0 0
    %2909 = vmatpush1.bf16.msra.mxu0 %v2749
    %2910 = vmatprep.subr.bf16.mxu0 0
    %2911 = vmatpush1.bf16.msra.mxu0 %v2750
    %2912 = vmatprep.subr.bf16.mxu0 0
    %2913 = vmatpush1.bf16.msra.mxu0 %v2751
    %2914 = vmatprep.subr.bf16.mxu0 0
    %2915 = vmatpush1.bf16.msra.mxu0 %v2752
    %2916 = vmatprep.subr.bf16.mxu0 0
    %2917 = vmatpush1.bf16.msra.mxu0 %v2753
    %2918 = vmatprep.subr.bf16.mxu0 0
    %2919 = vmatpush1.bf16.msra.mxu0 %v2754
    %2920 = vmatprep.subr.bf16.mxu0 0
    %2921 = vmatpush1.bf16.msra.mxu0 %v2755
    %2922 = vmatprep.subr.bf16.mxu0 0
    %2923 = vmatpush1.bf16.msra.mxu0 %v2756
    %2924 = vmatprep.subr.bf16.mxu0 0
    %2925 = vmatpush1.bf16.msra.mxu0 %v2757
    %2926 = vmatprep.mubr.bf16.mxu0 %v2330
    %2927 = vmatmul.mubr.bf16.gmra.mrb[0].mxu0 %v2329
    %v2928 = vpop.f32.mrb[0].mxu0
    %v2929 = vadd.f32 %v2889, %v2928
    %v2930 = vpop.f32.mrb[0].mxu0
    %v2931 = vpop.f32.mrb[0].mxu0
    %v2932 = vpop.f32.mrb[0].mxu0
    %2933 = vdwg.mxu0
    %2934 = vmatprep.subr.bf16.mxu0 0
    %2935 = vmatpush1.bf16.msra.mxu0 %v2758
    %2936 = vmatprep.subr.bf16.mxu0 0
    %2937 = vmatpush1.bf16.msra.mxu0 %v2759
    %2938 = vmatprep.subr.bf16.mxu0 0
    %2939 = vmatpush1.bf16.msra.mxu0 %v2760
    %2940 = vmatprep.subr.bf16.mxu0 0
    %2941 = vmatpush1.bf16.msra.mxu0 %v2761
    %2942 = vmatprep.subr.bf16.mxu0 0
    %2943 = vmatpush1.bf16.msra.mxu0 %v2762
    %2944 = vmatprep.subr.bf16.mxu0 0
    %2945 = vmatpush1.bf16.msra.mxu0 %v2763
    %2946 = vmatprep.subr.bf16.mxu0 0
    %2947 = vmatpush1.bf16.msra.mxu0 %v2764
    %2948 = vmatprep.subr.bf16.mxu0 0
    %2949 = vmatpush1.bf16.msra.mxu0 %v2765
    %2950 = vmatprep.subr.bf16.mxu0 0
    %2951 = vmatpush1.bf16.msra.mxu0 %v2766
    %2952 = vmatprep.subr.bf16.mxu0 0
    %2953 = vmatpush1.bf16.msra.mxu0 %v2767
    %2954 = vmatprep.subr.bf16.mxu0 0
    %2955 = vmatpush1.bf16.msra.mxu0 %v2768
    %2956 = vmatprep.subr.bf16.mxu0 0
    %2957 = vmatpush1.bf16.msra.mxu0 %v2769
    %2958 = vmatprep.subr.bf16.mxu0 0
    %2959 = vmatpush1.bf16.msra.mxu0 %v2770
    %2960 = vmatprep.subr.bf16.mxu0 0
    %2961 = vmatpush1.bf16.msra.mxu0 %v2771
    %2962 = vmatprep.subr.bf16.mxu0 0
    %2963 = vmatpush1.bf16.msra.mxu0 %v2772
    %2964 = vmatprep.subr.bf16.mxu0 0
    %2965 = vmatpush1.bf16.msra.mxu0 %v2773
    %2966 = vmatprep.mubr.bf16.mxu0 %v2332
    %2967 = vmatmul.mubr.bf16.gmra.mrb[0].mxu0 %v2331
    %v2968 = vpop.f32.mrb[0].mxu0
    %v2969 = vadd.f32 %v2929, %v2968
    %v2970 = vpop.f32.mrb[0].mxu0
    %v2971 = vpop.f32.mrb[0].mxu0
    %v2972 = vpop.f32.mrb[0].mxu0
    %2973 = vdwg.mxu0
    %2974 = vmatprep.subr.bf16.mxu0 0
    %2975 = vmatpush1.bf16.msra.mxu0 %v2774
    %2976 = vmatprep.subr.bf16.mxu0 0
    %2977 = vmatpush1.bf16.msra.mxu0 %v2775
    %2978 = vmatprep.subr.bf16.mxu0 0
    %2979 = vmatpush1.bf16.msra.mxu0 %v2776
    %2980 = vmatprep.subr.bf16.mxu0 0
    %2981 = vmatpush1.bf16.msra.mxu0 %v2777
    %2982 = vmatprep.subr.bf16.mxu0 0
    %2983 = vmatpush1.bf16.msra.mxu0 %v2778
    %2984 = vmatprep.subr.bf16.mxu0 0
    %2985 = vmatpush1.bf16.msra.mxu0 %v2779
    %2986 = vmatprep.subr.bf16.mxu0 0
    %2987 = vmatpush1.bf16.msra.mxu0 %v2780
    %2988 = vmatprep.subr.bf16.mxu0 0
    %2989 = vmatpush1.bf16.msra.mxu0 %v2781
    %2990 = vmatprep.subr.bf16.mxu0 0
    %2991 = vmatpush1.bf16.msra.mxu0 %v2782
    %2992 = vmatprep.subr.bf16.mxu0 0
    %2993 = vmatpush1.bf16.msra.mxu0 %v2783
    %2994 = vmatprep.subr.bf16.mxu0 0
    %2995 = vmatpush1.bf16.msra.mxu0 %v2784
    %2996 = vmatprep.subr.bf16.mxu0 0
    %2997 = vmatpush1.bf16.msra.mxu0 %v2785
    %2998 = vmatprep.subr.bf16.mxu0 0
    %2999 = vmatpush1.bf16.msra.mxu0 %v2786
    %3000 = vmatprep.subr.bf16.mxu0 0
    %3001 = vmatpush1.bf16.msra.mxu0 %v2787
    %3002 = vmatprep.subr.bf16.mxu0 0
    %3003 = vmatpush1.bf16.msra.mxu0 %v2788
    %3004 = vmatprep.subr.bf16.mxu0 0
    %3005 = vmatpush1.bf16.msra.mxu0 %v2789
    %3006 = vmatprep.mubr.bf16.mxu0 %v2334
    %3007 = vmatmul.mubr.bf16.gmra.mrb[0].mxu0 %v2333
    %v3008 = vpop.f32.mrb[0].mxu0
    %v3009 = vadd.f32 %v2969, %v3008
    %v3010 = vpop.f32.mrb[0].mxu0
    %v3011 = vpop.f32.mrb[0].mxu0
    %v3012 = vpop.f32.mrb[0].mxu0
    %3013 = vdwg.mxu0
    %v3014 = vmax.f32 %v3009, 0.0
    %v3015 = vld [vmem:[#allocation6] sm:$0xff]
    %v3016 = vld [vmem:[#allocation6 + $0x8] sm:$0xff]
    %v3017 = vld [vmem:[#allocation6 + $0x10] sm:$0xff]
    %v3018 = vld [vmem:[#allocation6 + $0x18] sm:$0xff]
    %v3019 = vld [vmem:[#allocation6 + $0x20] sm:$0xff]
    %v3020 = vld [vmem:[#allocation6 + $0x28] sm:$0xff]
    %v3021 = vld [vmem:[#allocation6 + $0x30] sm:$0xff]
    %v3022 = vld [vmem:[#allocation6 + $0x38] sm:$0xff]
    %v3023 = vld [vmem:[#allocation6 + $0x40] sm:$0xff]
    %v3024 = vld [vmem:[#allocation6 + $0x48] sm:$0xff]
    %v3025 = vld [vmem:[#allocation6 + $0x50] sm:$0xff]
    %v3026 = vld [vmem:[#allocation6 + $0x58] sm:$0xff]
    %v3027 = vld [vmem:[#allocation6 + $0x60] sm:$0xff]
    %v3028 = vld [vmem:[#allocation6 + $0x68] sm:$0xff]
    %v3029 = vld [vmem:[#allocation6 + $0x70] sm:$0xff]
    %v3030 = vld [vmem:[#allocation6 + $0x78] sm:$0xff]
    %v3031 = vld [vmem:[%s8] sm:$0x1]
    %v3033 = vlaneseq
    %v3034 = vshrl.u32 %v3033, 7
    %v3035 = vsub.s32 0, %v3034
    %v3036 = vrot.slane %v3031, %v3035
    %3038 = vmatprep.subr.mxu0 0.0
    %3039 = vmatpush1.msra.mxu0 %v3015
    %3040 = vmatprep.subr.mxu0 0.0
    %3041 = vmatpush1.msra.mxu0 %v3016
    %3042 = vmatprep.subr.mxu0 0.0
    %3043 = vmatpush1.msra.mxu0 %v3017
    %3044 = vmatprep.subr.mxu0 0.0
    %3045 = vmatpush1.msra.mxu0 %v3018
    %3046 = vmatprep.subr.mxu0 0.0
    %3047 = vmatpush1.msra.mxu0 %v3019
    %3048 = vmatprep.subr.mxu0 0.0
    %3049 = vmatpush1.msra.mxu0 %v3020
    %3050 = vmatprep.subr.mxu0 0.0
    %3051 = vmatpush1.msra.mxu0 %v3021
    %3052 = vmatprep.subr.mxu0 0.0
    %3053 = vmatpush1.msra.mxu0 %v3022
    %3054 = vmatprep.subr.mxu0 0.0
    %3055 = vmatpush1.msra.mxu0 %v3023
    %3056 = vmatprep.subr.mxu0 0.0
    %3057 = vmatpush1.msra.mxu0 %v3024
    %3058 = vmatprep.subr.mxu0 0.0
    %3059 = vmatpush1.msra.mxu0 %v3025
    %3060 = vmatprep.subr.mxu0 0.0
    %3061 = vmatpush1.msra.mxu0 %v3026
    %3062 = vmatprep.subr.mxu0 0.0
    %3063 = vmatpush1.msra.mxu0 %v3027
    %3064 = vmatprep.subr.mxu0 0.0
    %3065 = vmatpush1.msra.mxu0 %v3028
    %3066 = vmatprep.subr.mxu0 0.0
    %3067 = vmatpush1.msra.mxu0 %v3029
    %3068 = vmatprep.subr.mxu0 0.0
    %3069 = vmatpush1.msra.mxu0 %v3030
    %3070 = vmatprep.subr.mxu0 0.0
    %3071 = vmatpush1.msra.mxu0 0.0
    %3072 = vmatprep.subr.mxu0 0.0
    %3073 = vmatpush1.msra.mxu0 0.0
    %3074 = vmatprep.subr.mxu0 0.0
    %3075 = vmatpush1.msra.mxu0 0.0
    %3076 = vmatprep.subr.mxu0 0.0
    %3077 = vmatpush1.msra.mxu0 0.0
    %3078 = vmatprep.subr.mxu0 0.0
    %3079 = vmatpush1.msra.mxu0 0.0
    %3080 = vmatprep.subr.mxu0 0.0
    %3081 = vmatpush1.msra.mxu0 0.0
    %3082 = vmatprep.subr.mxu0 0.0
    %3083 = vmatpush1.msra.mxu0 0.0
    %3084 = vmatprep.subr.mxu0 0.0
    %3085 = vmatpush1.msra.mxu0 0.0
    %3086 = vmatprep.subr.mxu0 0.0
    %3087 = vmatpush1.msra.mxu0 0.0
    %3088 = vmatprep.subr.mxu0 0.0
    %3089 = vmatpush1.msra.mxu0 0.0
    %3090 = vmatprep.subr.mxu0 0.0
    %3091 = vmatpush1.msra.mxu0 0.0
    %3092 = vmatprep.subr.mxu0 0.0
    %3093 = vmatpush1.msra.mxu0 0.0
    %3094 = vmatprep.subr.mxu0 0.0
    %3095 = vmatpush1.msra.mxu0 0.0
    %3096 = vmatprep.subr.mxu0 0.0
    %3097 = vmatpush1.msra.mxu0 0.0
    %3098 = vmatprep.subr.mxu0 0.0
    %3099 = vmatpush1.msra.mxu0 0.0
    %3100 = vmatprep.subr.mxu0 0.0
    %3101 = vmatpush1.msra.mxu0 0.0
    %3102 = vmatprep.mubr.f32.mxu0 0.0
    %3103 = vmatmul.mubr.f32.gmra.mrb[0].mxu0 %v3014
    %v3104 = vpop.f32.mrb[0].mxu0
    %v3105 = vadd.f32 %v3036, %v3104
    %v3106 = vpop.f32.mrb[0].mxu0
    %3107 = vdwg.mxu0
    %3108 = vst [vmem:[%s9] sm:$0xff] %v3105
    // Predicated region
    $region50: #{wifi_cnn_forward.1} parent=1 // pred_check
      _
    $region51: #{wifi_cnn_forward.1} parent=1 // pred_check_branch
      %3110 = sbr.rel (0) target = $region53
    $region52: #{wifi_cnn_forward.1} parent=1 // pred_region
      _
    $region53: #{wifi_cnn_forward.1} parent=1 // pred_fallthru
      _
    // Predicated region
    $region54: #{wifi_cnn_forward.1} parent=1 // pred_check
      _
    $region55: #{wifi_cnn_forward.1} parent=1 // pred_check_branch
      %3112 = sbr.rel (0) target = $region57
    $region56: #{wifi_cnn_forward.1} parent=1 // pred_region
      _
    $region57: #{wifi_cnn_forward.1} parent=1 // pred_fallthru
      _
    %3113 = vsyncpa [#allocation3], 1
    %3114 = vsyncpa [#allocation5], 1

</llo_original>
